<compile_context>
chip_gen: v6e
topology: v6e:2x2x1
jax: 0.10.0
libtpu: 0.0.40
codegen_flags: <defaults>
</compile_context>

<pallas_src>
import functools

import jax
import jax.numpy as jnp
from jax.experimental import pallas as pl
from jax.experimental.pallas import tpu as pltpu

BN_EPS = 1e-5


def _round_up(x, m):
    return (x + m - 1) // m * m


# --------------------------------------------------------------------------- kernel
def _mm(a, b):
    # bf16 MXU operands, f32 accumulation.
    return jnp.dot(a.astype(jnp.bfloat16), b.astype(jnp.bfloat16),
                   preferred_element_type=jnp.float32)


def _im2col_t(x, tap_masks, H, W):
    """x: (C, H*W) channel-major image -> (9*C, H*W) transposed im2col (3x3, pad=1).

    Taps are built in VMEM with lane rotations + boundary masks (zero padding)."""
    HW = H * W
    taps = []
    k = 0
    for dy in (-1, 0, 1):
        for dx in (-1, 0, 1):
            d = dy * W + dx
            if d == 0:
                taps.append(x)
            else:
                shifted = pltpu.roll(x, shift=(-d) % HW, axis=1)
                taps.append(shifted * tap_masks[k:k + 1, :])
            k += 1
    return jnp.concatenate(taps, axis=0)


def _gub_kernel(masks_ref, depth_ref, guide_ref,
                wf1, sf1, tf1, wf2, sf2, tf2,
                wg1, sg1, tg1, wg2, sg2, tg2,
                wse1, wse2,
                wc1, sc1, tc1, wc2, sc2, tc2,
                wr, br,
                o_ref, *, H, W, in_f):
    HW = H * W
    masks = masks_ref[...]                                 # (9, HW) f32 boundary masks
    depth = depth_ref[0]                                   # (Cpad_d, HW), rows >= in_f zero
    guide = guide_ref[0]                                   # (Cpad_g, HW)

    # ---- feature branch: conv3x3 + BN + ReLU -> conv1x1 + BN + ReLU ----------------
    a = jnp.maximum(_mm(wf1[...], _im2col_t(depth, masks, H, W))
                    * sf1[...] + tf1[...], 0.0)            # (exp, HW)
    f = jnp.maximum(_mm(wf2[...], a) * sf2[...] + tf2[...], 0.0)   # (comb, HW), top half live

    # ---- guide branch (guidance_type == 'full') -------------------------------------
    a = jnp.maximum(_mm(wg1[...], _im2col_t(guide, masks, H, W))
                    * sg1[...] + tg1[...], 0.0)            # (exp, HW)
    g = jnp.maximum(_mm(wg2[...], a) * sg2[...] + tg2[...], 0.0)   # (comb, HW), bottom half live

    # channel concat via zero-row-embedded weights: rows never overlap.
    xy = f + g                                             # (comb, HW)

    # ---- SE channel attention (reduction = 1) ---------------------------------------
    # mean_p(W1 @ xy) == W1 @ mean_p(xy); broadcasting h along lanes keeps the second
    # FC as a full-width matmul too.
    comb = xy.shape[0]
    h = jnp.maximum(jnp.mean(jnp.dot(wse1[...], xy,
                                     preferred_element_type=jnp.float32),
                             axis=1, keepdims=True), 0.0)  # (comb, 1)
    gate = jnp.dot(wse2[...], jnp.broadcast_to(h, (comb, HW)),
                   preferred_element_type=jnp.float32)     # (comb, HW)
    gate = 1.0 / (1.0 + jnp.exp(-gate))                    # sigmoid (EUP)
    xy = xy * gate

    # ---- comb conv: conv3x3 + BN + ReLU -> conv1x1 + BN + ReLU ----------------------
    c = jnp.maximum(_mm(wc1[...], _im2col_t(xy, masks, H, W))
                    * sc1[...] + tc1[...], 0.0)            # (exp, HW)
    r = jnp.maximum(_mm(wc2[...], c) * sc2[...] + tc2[...], 0.0)   # (in_f, HW)

    # ---- residual add + final 1x1 reduce conv (with bias) ---------------------------
    r = r + depth[:in_f, :]
    o_ref[0] = (_mm(wr[...], r) + br[...]).astype(o_ref.dtype)     # (out_f, HW) lane-dense


# -------------------------------------------------------------------------- wrapper
def _make_tap_masks(H, W):
    """(9, H*W) f32: valid-pixel masks (zero padding) for the 9 taps of a 3x3 conv."""
    y, x = jnp.meshgrid(jnp.arange(H), jnp.arange(W), indexing="ij")
    y = y.reshape(-1)
    x = x.reshape(-1)
    masks = []
    for dy in (-1, 0, 1):
        for dx in (-1, 0, 1):
            m = ((y + dy >= 0) & (y + dy < H) & (x + dx >= 0) & (x + dx < W))
            masks.append(m.astype(jnp.float32))
    return jnp.stack(masks, axis=0)


def guided_upsampling_block(guide, depth, p):
    """guide: (B, guide_f, H, W), depth: (B, in_f, H, W) NCHW -> (B, out_f, H, W)."""
    B, in_f, H, W = depth.shape
    guide_f = guide.shape[1]
    HW = H * W
    cpad_d = _round_up(in_f, 8)
    cpad_g = _round_up(guide_f, 8)
    exp = p["feat1"][0].shape[0]
    comb = p["feat2"][0].shape[0]
    out_f = p["reduce_w"].shape[0]

    # glue: flatten spatial dims; zero-pad channels to a sublane multiple so the
    # in-kernel tap concatenation stays 8-aligned (tiles are 8 sublanes anyway).
    depth_p = jnp.pad(depth.reshape(B, in_f, HW), ((0, 0), (0, cpad_d - in_f), (0, 0)))
    guide_p = jnp.pad(guide.reshape(B, guide_f, HW), ((0, 0), (0, cpad_g - guide_f), (0, 0)))
    tap_masks = _make_tap_masks(H, W)

    weights = (*p["feat1"], *p["feat2"], *p["guide1"], *p["guide2"],
               p["se_w1"], p["se_w2"], *p["comb1"], *p["comb2"],
               p["reduce_w"], p["reduce_b"])

    def _wspec(shape):
        return pl.BlockSpec(shape, lambda b: (0,) * len(shape))

    macs = HW * (9 * cpad_d * exp + 9 * cpad_g * exp + 2 * exp * comb
                 + 2 * comb * comb + 9 * comb * exp + exp * in_f + in_f * out_f)
    bytes_accessed = 4 * (depth_p.size + guide_p.size + B * out_f * HW
                          + B * sum(w.size for w in weights) + tap_masks.size)

    kernel = functools.partial(_gub_kernel, H=H, W=W, in_f=in_f)
    out = pl.pallas_call(
        kernel,
        out_shape=jax.ShapeDtypeStruct((B, out_f, HW), jnp.float32),
        grid=(B,),
        in_specs=[
            pl.BlockSpec((9, HW), lambda b: (0, 0)),
            pl.BlockSpec((1, cpad_d, HW), lambda b: (b, 0, 0)),
            pl.BlockSpec((1, cpad_g, HW), lambda b: (b, 0, 0)),
            *[_wspec(w.shape) for w in weights],
        ],
        out_specs=pl.BlockSpec((1, out_f, HW), lambda b: (b, 0, 0)),
        compiler_params=pltpu.CompilerParams(dimension_semantics=("parallel",)),
        cost_estimate=pl.CostEstimate(flops=2 * B * macs,
                                      transcendentals=B * comb * HW,
                                      bytes_accessed=bytes_accessed),
    )(tap_masks, depth_p, guide_p, *weights)
    return out.reshape(B, out_f, H, W)


# ----------------------------------------------------------------------- parameters
def _bn_fold(key, cout):
    kg, kb, km, kv = jax.random.split(key, 4)
    gamma = jax.random.uniform(kg, (cout,), jnp.float32, 0.5, 1.5)
    beta = 0.1 * jax.random.normal(kb, (cout,), jnp.float32)
    mean = 0.1 * jax.random.normal(km, (cout,), jnp.float32)
    var = jax.random.uniform(kv, (cout,), jnp.float32, 0.5, 1.5)
    scale = gamma / jnp.sqrt(var + BN_EPS)
    return scale, beta - mean * scale


def conv3x3_bn_params(key, cin, cout, cin_pad):
    """Conv2d(cin,cout,3,pad=1,bias) + BatchNorm2d (eval) folded; weights laid out as
    (cout, 9*cin_pad) for the transposed in-kernel im2col matmul."""
    kw, kb, kbn = jax.random.split(key, 3)
    w = 0.1 * jax.random.normal(kw, (3, 3, cin, cout), jnp.float32)   # HWIO
    b = 0.1 * jax.random.normal(kb, (cout,), jnp.float32)
    scale, shift0 = _bn_fold(kbn, cout)
    shift = shift0 + b * scale
    w_pad = jnp.pad(w, ((0, 0), (0, 0), (0, cin_pad - cin), (0, 0)))
    w_t = w_pad.reshape(9 * cin_pad, cout).T                          # (cout, 9*cin_pad)
    return w_t, scale.reshape(cout, 1), shift.reshape(cout, 1)


def conv1x1_bn_params(key, cin, cout, rows_out, row_off):
    """Conv2d(cin,cout,1,bias) + BatchNorm2d (eval) folded, embedded into `rows_out`
    output rows at `row_off` (zeros elsewhere) so the two branches sum into the
    concatenated tensor without any concat."""
    kw, kb, kbn = jax.random.split(key, 3)
    w = 0.1 * jax.random.normal(kw, (cout, cin), jnp.float32)         # (out, in)
    b = 0.1 * jax.random.normal(kb, (cout,), jnp.float32)
    scale, shift0 = _bn_fold(kbn, cout)
    shift = shift0 + b * scale
    w_full = jnp.zeros((rows_out, cin), jnp.float32).at[row_off:row_off + cout].set(w)
    s_full = jnp.zeros((rows_out, 1), jnp.float32).at[row_off:row_off + cout].set(
        scale.reshape(-1, 1))
    t_full = jnp.zeros((rows_out, 1), jnp.float32).at[row_off:row_off + cout].set(
        shift.reshape(-1, 1))
    return w_full, s_full, t_full


# --------------------------------------------------------------------------- driver
if __name__ == "__main__":
    B, H, W = 2, 16, 16
    in_f, exp_f, out_f, guide_f = 4, 8, 4, 3
    comb = exp_f // 2 * 2
    cpad_d = _round_up(in_f, 8)
    cpad_g = _round_up(guide_f, 8)

    root = jax.random.PRNGKey(0)
    keys = jax.random.split(root, 12)

    params = {
        "feat1": conv3x3_bn_params(keys[0], in_f, exp_f, cpad_d),
        "feat2": conv1x1_bn_params(keys[1], exp_f, exp_f // 2, comb, 0),
        "guide1": conv3x3_bn_params(keys[2], guide_f, exp_f, cpad_g),
        "guide2": conv1x1_bn_params(keys[3], exp_f, exp_f // 2, comb, exp_f // 2),
        "comb1": conv3x3_bn_params(keys[4], comb, exp_f, comb),
        "comb2": conv1x1_bn_params(keys[5], exp_f, in_f, in_f, 0),
        "reduce_w": 0.1 * jax.random.normal(keys[6], (out_f, in_f), jnp.float32),
        "reduce_b": 0.1 * jax.random.normal(keys[7], (out_f, 1), jnp.float32),
        "se_w1": 0.1 * jax.random.normal(keys[8], (comb, comb), jnp.float32),
        "se_w2": 0.1 * jax.random.normal(keys[9], (comb, comb), jnp.float32),
    }

    guide = jax.random.normal(keys[10], (B, guide_f, H, W), jnp.float32)
    depth = jax.random.normal(keys[11], (B, in_f, H, W), jnp.float32)

    out = jax.jit(guided_upsampling_block)(guide, depth, params)
    jax.block_until_ready(out)
    assert out.shape == (B, out_f, H, W), out.shape
    print("KERNEL_OK")
</pallas_src>

<mosaic_0001>
module attributes {stable_mosaic.version = 11 : i64} {
  func.func @_gub_kernel(%arg0: i32, %arg1: memref<9x256xf32, #tpu.memory_space<vmem>>, %arg2: memref<1x8x256xf32, #tpu.memory_space<vmem>>, %arg3: memref<1x8x256xf32, #tpu.memory_space<vmem>>, %arg4: memref<8x72xf32, #tpu.memory_space<vmem>>, %arg5: memref<8x1xf32, #tpu.memory_space<vmem>>, %arg6: memref<8x1xf32, #tpu.memory_space<vmem>>, %arg7: memref<8x8xf32, #tpu.memory_space<vmem>>, %arg8: memref<8x1xf32, #tpu.memory_space<vmem>>, %arg9: memref<8x1xf32, #tpu.memory_space<vmem>>, %arg10: memref<8x72xf32, #tpu.memory_space<vmem>>, %arg11: memref<8x1xf32, #tpu.memory_space<vmem>>, %arg12: memref<8x1xf32, #tpu.memory_space<vmem>>, %arg13: memref<8x8xf32, #tpu.memory_space<vmem>>, %arg14: memref<8x1xf32, #tpu.memory_space<vmem>>, %arg15: memref<8x1xf32, #tpu.memory_space<vmem>>, %arg16: memref<8x8xf32, #tpu.memory_space<vmem>>, %arg17: memref<8x8xf32, #tpu.memory_space<vmem>>, %arg18: memref<8x72xf32, #tpu.memory_space<vmem>>, %arg19: memref<8x1xf32, #tpu.memory_space<vmem>>, %arg20: memref<8x1xf32, #tpu.memory_space<vmem>>, %arg21: memref<4x8xf32, #tpu.memory_space<vmem>>, %arg22: memref<4x1xf32, #tpu.memory_space<vmem>>, %arg23: memref<4x1xf32, #tpu.memory_space<vmem>>, %arg24: memref<4x4xf32, #tpu.memory_space<vmem>>, %arg25: memref<4x1xf32, #tpu.memory_space<vmem>>, %arg26: memref<1x4x256xf32, #tpu.memory_space<vmem>>) attributes {dimension_semantics = [#tpu.dimension_semantics<parallel>], iteration_bounds = array<i64: 2>, scalar_prefetch = 0 : i64, scratch_operands = 0 : i64, tpu.core_type = #tpu.core_type<tc>, window_params = [{pipeline_mode = #tpu.pipeline_mode<synchronous>, transform_indices = @transform_0, window_bounds = array<i64: 9, 256>}, {transform_indices = @transform_1, window_bounds = array<i64: 1, 8, 256>}, {transform_indices = @transform_2, window_bounds = array<i64: 1, 8, 256>}, {pipeline_mode = #tpu.pipeline_mode<synchronous>, transform_indices = @transform_3, window_bounds = array<i64: 8, 72>}, {pipeline_mode = #tpu.pipeline_mode<synchronous>, transform_indices = @transform_4, window_bounds = array<i64: 8, 1>}, {pipeline_mode = #tpu.pipeline_mode<synchronous>, transform_indices = @transform_5, window_bounds = array<i64: 8, 1>}, {pipeline_mode = #tpu.pipeline_mode<synchronous>, transform_indices = @transform_6, window_bounds = array<i64: 8, 8>}, {pipeline_mode = #tpu.pipeline_mode<synchronous>, transform_indices = @transform_7, window_bounds = array<i64: 8, 1>}, {pipeline_mode = #tpu.pipeline_mode<synchronous>, transform_indices = @transform_8, window_bounds = array<i64: 8, 1>}, {pipeline_mode = #tpu.pipeline_mode<synchronous>, transform_indices = @transform_9, window_bounds = array<i64: 8, 72>}, {pipeline_mode = #tpu.pipeline_mode<synchronous>, transform_indices = @transform_10, window_bounds = array<i64: 8, 1>}, {pipeline_mode = #tpu.pipeline_mode<synchronous>, transform_indices = @transform_11, window_bounds = array<i64: 8, 1>}, {pipeline_mode = #tpu.pipeline_mode<synchronous>, transform_indices = @transform_12, window_bounds = array<i64: 8, 8>}, {pipeline_mode = #tpu.pipeline_mode<synchronous>, transform_indices = @transform_13, window_bounds = array<i64: 8, 1>}, {pipeline_mode = #tpu.pipeline_mode<synchronous>, transform_indices = @transform_14, window_bounds = array<i64: 8, 1>}, {pipeline_mode = #tpu.pipeline_mode<synchronous>, transform_indices = @transform_15, window_bounds = array<i64: 8, 8>}, {pipeline_mode = #tpu.pipeline_mode<synchronous>, transform_indices = @transform_16, window_bounds = array<i64: 8, 8>}, {pipeline_mode = #tpu.pipeline_mode<synchronous>, transform_indices = @transform_17, window_bounds = array<i64: 8, 72>}, {pipeline_mode = #tpu.pipeline_mode<synchronous>, transform_indices = @transform_18, window_bounds = array<i64: 8, 1>}, {pipeline_mode = #tpu.pipeline_mode<synchronous>, transform_indices = @transform_19, window_bounds = array<i64: 8, 1>}, {pipeline_mode = #tpu.pipeline_mode<synchronous>, transform_indices = @transform_20, window_bounds = array<i64: 4, 8>}, {pipeline_mode = #tpu.pipeline_mode<synchronous>, transform_indices = @transform_21, window_bounds = array<i64: 4, 1>}, {pipeline_mode = #tpu.pipeline_mode<synchronous>, transform_indices = @transform_22, window_bounds = array<i64: 4, 1>}, {pipeline_mode = #tpu.pipeline_mode<synchronous>, transform_indices = @transform_23, window_bounds = array<i64: 4, 4>}, {pipeline_mode = #tpu.pipeline_mode<synchronous>, transform_indices = @transform_24, window_bounds = array<i64: 4, 1>}, {transform_indices = @transform_25, window_bounds = array<i64: 1, 4, 256>}]} {
    %c0 = arith.constant 0 : index
    %c0_0 = arith.constant 0 : index
    %0 = vector.load %arg1[%c0, %c0_0] : memref<9x256xf32, #tpu.memory_space<vmem>>, vector<9x256xf32>
    %c0_1 = arith.constant 0 : index
    %c0_2 = arith.constant 0 : index
    %c0_3 = arith.constant 0 : index
    %1 = vector.load %arg2[%c0_1, %c0_2, %c0_3] : memref<1x8x256xf32, #tpu.memory_space<vmem>>, vector<1x8x256xf32>
    %2 = vector.shape_cast %1 : vector<1x8x256xf32> to vector<8x256xf32>
    %c0_4 = arith.constant 0 : index
    %c0_5 = arith.constant 0 : index
    %c0_6 = arith.constant 0 : index
    %3 = vector.load %arg3[%c0_4, %c0_5, %c0_6] : memref<1x8x256xf32, #tpu.memory_space<vmem>>, vector<1x8x256xf32>
    %4 = vector.shape_cast %3 : vector<1x8x256xf32> to vector<8x256xf32>
    %c0_7 = arith.constant 0 : index
    %c0_8 = arith.constant 0 : index
    %5 = vector.load %arg4[%c0_7, %c0_8] : memref<8x72xf32, #tpu.memory_space<vmem>>, vector<8x72xf32>
    %c17_i32 = arith.constant 17 : i32
    %6 = tpu.dynamic_rotate %2 by %c17_i32 dim 1 : vector<8x256xf32>, i32 -> vector<8x256xf32>
    %7 = vector.extract_strided_slice %0 {offsets = [0, 0], sizes = [1, 256], strides = [1, 1]} : vector<9x256xf32> to vector<1x256xf32>
    %8 = vector.broadcast %7 : vector<1x256xf32> to vector<8x256xf32>
    %9 = arith.mulf %6, %8 : vector<8x256xf32>
    %c16_i32 = arith.constant 16 : i32
    %10 = tpu.dynamic_rotate %2 by %c16_i32 dim 1 : vector<8x256xf32>, i32 -> vector<8x256xf32>
    %11 = vector.extract_strided_slice %0 {offsets = [1, 0], sizes = [1, 256], strides = [1, 1]} : vector<9x256xf32> to vector<1x256xf32>
    %12 = vector.broadcast %11 : vector<1x256xf32> to vector<8x256xf32>
    %13 = arith.mulf %10, %12 : vector<8x256xf32>
    %c15_i32 = arith.constant 15 : i32
    %14 = tpu.dynamic_rotate %2 by %c15_i32 dim 1 : vector<8x256xf32>, i32 -> vector<8x256xf32>
    %15 = vector.extract_strided_slice %0 {offsets = [2, 0], sizes = [1, 256], strides = [1, 1]} : vector<9x256xf32> to vector<1x256xf32>
    %16 = vector.broadcast %15 : vector<1x256xf32> to vector<8x256xf32>
    %17 = arith.mulf %14, %16 : vector<8x256xf32>
    %c1_i32 = arith.constant 1 : i32
    %18 = tpu.dynamic_rotate %2 by %c1_i32 dim 1 : vector<8x256xf32>, i32 -> vector<8x256xf32>
    %19 = vector.extract_strided_slice %0 {offsets = [3, 0], sizes = [1, 256], strides = [1, 1]} : vector<9x256xf32> to vector<1x256xf32>
    %20 = vector.broadcast %19 : vector<1x256xf32> to vector<8x256xf32>
    %21 = arith.mulf %18, %20 : vector<8x256xf32>
    %c255_i32 = arith.constant 255 : i32
    %22 = tpu.dynamic_rotate %2 by %c255_i32 dim 1 : vector<8x256xf32>, i32 -> vector<8x256xf32>
    %23 = vector.extract_strided_slice %0 {offsets = [5, 0], sizes = [1, 256], strides = [1, 1]} : vector<9x256xf32> to vector<1x256xf32>
    %24 = vector.broadcast %23 : vector<1x256xf32> to vector<8x256xf32>
    %25 = arith.mulf %22, %24 : vector<8x256xf32>
    %c241_i32 = arith.constant 241 : i32
    %26 = tpu.dynamic_rotate %2 by %c241_i32 dim 1 : vector<8x256xf32>, i32 -> vector<8x256xf32>
    %27 = vector.extract_strided_slice %0 {offsets = [6, 0], sizes = [1, 256], strides = [1, 1]} : vector<9x256xf32> to vector<1x256xf32>
    %28 = vector.broadcast %27 : vector<1x256xf32> to vector<8x256xf32>
    %29 = arith.mulf %26, %28 : vector<8x256xf32>
    %c240_i32 = arith.constant 240 : i32
    %30 = tpu.dynamic_rotate %2 by %c240_i32 dim 1 : vector<8x256xf32>, i32 -> vector<8x256xf32>
    %31 = vector.extract_strided_slice %0 {offsets = [7, 0], sizes = [1, 256], strides = [1, 1]} : vector<9x256xf32> to vector<1x256xf32>
    %32 = vector.broadcast %31 : vector<1x256xf32> to vector<8x256xf32>
    %33 = arith.mulf %30, %32 : vector<8x256xf32>
    %c239_i32 = arith.constant 239 : i32
    %34 = tpu.dynamic_rotate %2 by %c239_i32 dim 1 : vector<8x256xf32>, i32 -> vector<8x256xf32>
    %35 = vector.extract_strided_slice %0 {offsets = [8, 0], sizes = [1, 256], strides = [1, 1]} : vector<9x256xf32> to vector<1x256xf32>
    %36 = vector.broadcast %35 : vector<1x256xf32> to vector<8x256xf32>
    %37 = arith.mulf %34, %36 : vector<8x256xf32>
    %38 = tpu.concatenate %9, %13, %17, %21, %2, %25, %29, %33, %37 in 0 : vector<8x256xf32>, vector<8x256xf32>, vector<8x256xf32>, vector<8x256xf32>, vector<8x256xf32>, vector<8x256xf32>, vector<8x256xf32>, vector<8x256xf32>, vector<8x256xf32> -> vector<72x256xf32>
    %39 = arith.truncf %5 : vector<8x72xf32> to vector<8x72xbf16>
    %40 = arith.truncf %38 : vector<72x256xf32> to vector<72x256xbf16>
    %cst = arith.constant dense<0.000000e+00> : vector<8x256xf32>
    %41 = tpu.matmul %39, %40, %cst {dimension_numbers = #tpu.dot_dimension_numbers<[1], [0], [0], [1], [0, 0, 1, 1], [], []>} : vector<8x72xbf16>, vector<72x256xbf16>, vector<8x256xf32> -> vector<8x256xf32>
    %c0_9 = arith.constant 0 : index
    %c0_10 = arith.constant 0 : index
    %42 = vector.load %arg5[%c0_9, %c0_10] : memref<8x1xf32, #tpu.memory_space<vmem>>, vector<8x1xf32>
    %43 = vector.broadcast %42 : vector<8x1xf32> to vector<8x256xf32>
    %44 = arith.mulf %41, %43 : vector<8x256xf32>
    %c0_11 = arith.constant 0 : index
    %c0_12 = arith.constant 0 : index
    %45 = vector.load %arg6[%c0_11, %c0_12] : memref<8x1xf32, #tpu.memory_space<vmem>>, vector<8x1xf32>
    %46 = vector.broadcast %45 : vector<8x1xf32> to vector<8x256xf32>
    %47 = arith.addf %44, %46 : vector<8x256xf32>
    %cst_13 = arith.constant 0.000000e+00 : f32
    %48 = vector.broadcast %cst_13 : f32 to vector<8x256xf32>
    %49 = arith.maximumf %47, %48 : vector<8x256xf32>
    %c0_14 = arith.constant 0 : index
    %c0_15 = arith.constant 0 : index
    %50 = vector.load %arg7[%c0_14, %c0_15] : memref<8x8xf32, #tpu.memory_space<vmem>>, vector<8x8xf32>
    %51 = arith.truncf %50 : vector<8x8xf32> to vector<8x8xbf16>
    %52 = arith.truncf %49 : vector<8x256xf32> to vector<8x256xbf16>
    %cst_16 = arith.constant dense<0.000000e+00> : vector<8x256xf32>
    %53 = tpu.matmul %51, %52, %cst_16 {dimension_numbers = #tpu.dot_dimension_numbers<[1], [0], [0], [1], [0, 0, 1, 1], [], []>} : vector<8x8xbf16>, vector<8x256xbf16>, vector<8x256xf32> -> vector<8x256xf32>
    %c0_17 = arith.constant 0 : index
    %c0_18 = arith.constant 0 : index
    %54 = vector.load %arg8[%c0_17, %c0_18] : memref<8x1xf32, #tpu.memory_space<vmem>>, vector<8x1xf32>
    %55 = vector.broadcast %54 : vector<8x1xf32> to vector<8x256xf32>
    %56 = arith.mulf %53, %55 : vector<8x256xf32>
    %c0_19 = arith.constant 0 : index
    %c0_20 = arith.constant 0 : index
    %57 = vector.load %arg9[%c0_19, %c0_20] : memref<8x1xf32, #tpu.memory_space<vmem>>, vector<8x1xf32>
    %58 = vector.broadcast %57 : vector<8x1xf32> to vector<8x256xf32>
    %59 = arith.addf %56, %58 : vector<8x256xf32>
    %cst_21 = arith.constant 0.000000e+00 : f32
    %60 = vector.broadcast %cst_21 : f32 to vector<8x256xf32>
    %61 = arith.maximumf %59, %60 : vector<8x256xf32>
    %c0_22 = arith.constant 0 : index
    %c0_23 = arith.constant 0 : index
    %62 = vector.load %arg10[%c0_22, %c0_23] : memref<8x72xf32, #tpu.memory_space<vmem>>, vector<8x72xf32>
    %c17_i32_24 = arith.constant 17 : i32
    %63 = tpu.dynamic_rotate %4 by %c17_i32_24 dim 1 : vector<8x256xf32>, i32 -> vector<8x256xf32>
    %64 = vector.extract_strided_slice %0 {offsets = [0, 0], sizes = [1, 256], strides = [1, 1]} : vector<9x256xf32> to vector<1x256xf32>
    %65 = vector.broadcast %64 : vector<1x256xf32> to vector<8x256xf32>
    %66 = arith.mulf %63, %65 : vector<8x256xf32>
    %c16_i32_25 = arith.constant 16 : i32
    %67 = tpu.dynamic_rotate %4 by %c16_i32_25 dim 1 : vector<8x256xf32>, i32 -> vector<8x256xf32>
    %68 = vector.extract_strided_slice %0 {offsets = [1, 0], sizes = [1, 256], strides = [1, 1]} : vector<9x256xf32> to vector<1x256xf32>
    %69 = vector.broadcast %68 : vector<1x256xf32> to vector<8x256xf32>
    %70 = arith.mulf %67, %69 : vector<8x256xf32>
    %c15_i32_26 = arith.constant 15 : i32
    %71 = tpu.dynamic_rotate %4 by %c15_i32_26 dim 1 : vector<8x256xf32>, i32 -> vector<8x256xf32>
    %72 = vector.extract_strided_slice %0 {offsets = [2, 0], sizes = [1, 256], strides = [1, 1]} : vector<9x256xf32> to vector<1x256xf32>
    %73 = vector.broadcast %72 : vector<1x256xf32> to vector<8x256xf32>
    %74 = arith.mulf %71, %73 : vector<8x256xf32>
    %c1_i32_27 = arith.constant 1 : i32
    %75 = tpu.dynamic_rotate %4 by %c1_i32_27 dim 1 : vector<8x256xf32>, i32 -> vector<8x256xf32>
    %76 = vector.extract_strided_slice %0 {offsets = [3, 0], sizes = [1, 256], strides = [1, 1]} : vector<9x256xf32> to vector<1x256xf32>
    %77 = vector.broadcast %76 : vector<1x256xf32> to vector<8x256xf32>
    %78 = arith.mulf %75, %77 : vector<8x256xf32>
    %c255_i32_28 = arith.constant 255 : i32
    %79 = tpu.dynamic_rotate %4 by %c255_i32_28 dim 1 : vector<8x256xf32>, i32 -> vector<8x256xf32>
    %80 = vector.extract_strided_slice %0 {offsets = [5, 0], sizes = [1, 256], strides = [1, 1]} : vector<9x256xf32> to vector<1x256xf32>
    %81 = vector.broadcast %80 : vector<1x256xf32> to vector<8x256xf32>
    %82 = arith.mulf %79, %81 : vector<8x256xf32>
    %c241_i32_29 = arith.constant 241 : i32
    %83 = tpu.dynamic_rotate %4 by %c241_i32_29 dim 1 : vector<8x256xf32>, i32 -> vector<8x256xf32>
    %84 = vector.extract_strided_slice %0 {offsets = [6, 0], sizes = [1, 256], strides = [1, 1]} : vector<9x256xf32> to vector<1x256xf32>
    %85 = vector.broadcast %84 : vector<1x256xf32> to vector<8x256xf32>
    %86 = arith.mulf %83, %85 : vector<8x256xf32>
    %c240_i32_30 = arith.constant 240 : i32
    %87 = tpu.dynamic_rotate %4 by %c240_i32_30 dim 1 : vector<8x256xf32>, i32 -> vector<8x256xf32>
    %88 = vector.extract_strided_slice %0 {offsets = [7, 0], sizes = [1, 256], strides = [1, 1]} : vector<9x256xf32> to vector<1x256xf32>
    %89 = vector.broadcast %88 : vector<1x256xf32> to vector<8x256xf32>
    %90 = arith.mulf %87, %89 : vector<8x256xf32>
    %c239_i32_31 = arith.constant 239 : i32
    %91 = tpu.dynamic_rotate %4 by %c239_i32_31 dim 1 : vector<8x256xf32>, i32 -> vector<8x256xf32>
    %92 = vector.extract_strided_slice %0 {offsets = [8, 0], sizes = [1, 256], strides = [1, 1]} : vector<9x256xf32> to vector<1x256xf32>
    %93 = vector.broadcast %92 : vector<1x256xf32> to vector<8x256xf32>
    %94 = arith.mulf %91, %93 : vector<8x256xf32>
    %95 = tpu.concatenate %66, %70, %74, %78, %4, %82, %86, %90, %94 in 0 : vector<8x256xf32>, vector<8x256xf32>, vector<8x256xf32>, vector<8x256xf32>, vector<8x256xf32>, vector<8x256xf32>, vector<8x256xf32>, vector<8x256xf32>, vector<8x256xf32> -> vector<72x256xf32>
    %96 = arith.truncf %62 : vector<8x72xf32> to vector<8x72xbf16>
    %97 = arith.truncf %95 : vector<72x256xf32> to vector<72x256xbf16>
    %cst_32 = arith.constant dense<0.000000e+00> : vector<8x256xf32>
    %98 = tpu.matmul %96, %97, %cst_32 {dimension_numbers = #tpu.dot_dimension_numbers<[1], [0], [0], [1], [0, 0, 1, 1], [], []>} : vector<8x72xbf16>, vector<72x256xbf16>, vector<8x256xf32> -> vector<8x256xf32>
    %c0_33 = arith.constant 0 : index
    %c0_34 = arith.constant 0 : index
    %99 = vector.load %arg11[%c0_33, %c0_34] : memref<8x1xf32, #tpu.memory_space<vmem>>, vector<8x1xf32>
    %100 = vector.broadcast %99 : vector<8x1xf32> to vector<8x256xf32>
    %101 = arith.mulf %98, %100 : vector<8x256xf32>
    %c0_35 = arith.constant 0 : index
    %c0_36 = arith.constant 0 : index
    %102 = vector.load %arg12[%c0_35, %c0_36] : memref<8x1xf32, #tpu.memory_space<vmem>>, vector<8x1xf32>
    %103 = vector.broadcast %102 : vector<8x1xf32> to vector<8x256xf32>
    %104 = arith.addf %101, %103 : vector<8x256xf32>
    %cst_37 = arith.constant 0.000000e+00 : f32
    %105 = vector.broadcast %cst_37 : f32 to vector<8x256xf32>
    %106 = arith.maximumf %104, %105 : vector<8x256xf32>
    %c0_38 = arith.constant 0 : index
    %c0_39 = arith.constant 0 : index
    %107 = vector.load %arg13[%c0_38, %c0_39] : memref<8x8xf32, #tpu.memory_space<vmem>>, vector<8x8xf32>
    %108 = arith.truncf %107 : vector<8x8xf32> to vector<8x8xbf16>
    %109 = arith.truncf %106 : vector<8x256xf32> to vector<8x256xbf16>
    %cst_40 = arith.constant dense<0.000000e+00> : vector<8x256xf32>
    %110 = tpu.matmul %108, %109, %cst_40 {dimension_numbers = #tpu.dot_dimension_numbers<[1], [0], [0], [1], [0, 0, 1, 1], [], []>} : vector<8x8xbf16>, vector<8x256xbf16>, vector<8x256xf32> -> vector<8x256xf32>
    %c0_41 = arith.constant 0 : index
    %c0_42 = arith.constant 0 : index
    %111 = vector.load %arg14[%c0_41, %c0_42] : memref<8x1xf32, #tpu.memory_space<vmem>>, vector<8x1xf32>
    %112 = vector.broadcast %111 : vector<8x1xf32> to vector<8x256xf32>
    %113 = arith.mulf %110, %112 : vector<8x256xf32>
    %c0_43 = arith.constant 0 : index
    %c0_44 = arith.constant 0 : index
    %114 = vector.load %arg15[%c0_43, %c0_44] : memref<8x1xf32, #tpu.memory_space<vmem>>, vector<8x1xf32>
    %115 = vector.broadcast %114 : vector<8x1xf32> to vector<8x256xf32>
    %116 = arith.addf %113, %115 : vector<8x256xf32>
    %cst_45 = arith.constant 0.000000e+00 : f32
    %117 = vector.broadcast %cst_45 : f32 to vector<8x256xf32>
    %118 = arith.maximumf %116, %117 : vector<8x256xf32>
    %119 = arith.addf %61, %118 : vector<8x256xf32>
    %c0_46 = arith.constant 0 : index
    %c0_47 = arith.constant 0 : index
    %120 = vector.load %arg16[%c0_46, %c0_47] : memref<8x8xf32, #tpu.memory_space<vmem>>, vector<8x8xf32>
    %cst_48 = arith.constant dense<0.000000e+00> : vector<8x256xf32>
    %121 = tpu.matmul %120, %119, %cst_48 {dimension_numbers = #tpu.dot_dimension_numbers<[1], [0], [0], [1], [0, 0, 1, 1], [], []>} : vector<8x8xf32>, vector<8x256xf32>, vector<8x256xf32> -> vector<8x256xf32>
    %cst_49 = arith.constant dense<0.000000e+00> : vector<8xf32>
    %122 = vector.multi_reduction <add>, %121, %cst_49 [1] : vector<8x256xf32> to vector<8xf32>
    %123 = vector.shape_cast %122 : vector<8xf32> to vector<8x1xf32>
    %cst_50 = arith.constant 2.560000e+02 : f32
    %124 = vector.broadcast %cst_50 : f32 to vector<8x1xf32>
    %125 = arith.divf %123, %124 : vector<8x1xf32>
    %cst_51 = arith.constant 0.000000e+00 : f32
    %126 = vector.broadcast %cst_51 : f32 to vector<8x1xf32>
    %127 = arith.maximumf %125, %126 : vector<8x1xf32>
    %c0_52 = arith.constant 0 : index
    %c0_53 = arith.constant 0 : index
    %128 = vector.load %arg17[%c0_52, %c0_53] : memref<8x8xf32, #tpu.memory_space<vmem>>, vector<8x8xf32>
    %129 = vector.shape_cast %127 : vector<8x1xf32> to vector<8x1xf32>
    %130 = vector.broadcast %129 : vector<8x1xf32> to vector<8x256xf32>
    %cst_54 = arith.constant dense<0.000000e+00> : vector<8x256xf32>
    %131 = tpu.matmul %128, %130, %cst_54 {dimension_numbers = #tpu.dot_dimension_numbers<[1], [0], [0], [1], [0, 0, 1, 1], [], []>} : vector<8x8xf32>, vector<8x256xf32>, vector<8x256xf32> -> vector<8x256xf32>
    %cst_55 = arith.constant 0.000000e+00 : f32
    %132 = vector.broadcast %cst_55 : f32 to vector<8x256xf32>
    %133 = arith.subf %132, %131 : vector<8x256xf32>
    %134 = math.exp %133 : vector<8x256xf32>
    %cst_56 = arith.constant 1.000000e+00 : f32
    %135 = vector.broadcast %cst_56 : f32 to vector<8x256xf32>
    %136 = arith.addf %135, %134 : vector<8x256xf32>
    %cst_57 = arith.constant 1.000000e+00 : f32
    %137 = vector.broadcast %cst_57 : f32 to vector<8x256xf32>
    %138 = arith.divf %137, %136 : vector<8x256xf32>
    %139 = arith.mulf %119, %138 : vector<8x256xf32>
    %c0_58 = arith.constant 0 : index
    %c0_59 = arith.constant 0 : index
    %140 = vector.load %arg18[%c0_58, %c0_59] : memref<8x72xf32, #tpu.memory_space<vmem>>, vector<8x72xf32>
    %c17_i32_60 = arith.constant 17 : i32
    %141 = tpu.dynamic_rotate %139 by %c17_i32_60 dim 1 : vector<8x256xf32>, i32 -> vector<8x256xf32>
    %142 = vector.extract_strided_slice %0 {offsets = [0, 0], sizes = [1, 256], strides = [1, 1]} : vector<9x256xf32> to vector<1x256xf32>
    %143 = vector.broadcast %142 : vector<1x256xf32> to vector<8x256xf32>
    %144 = arith.mulf %141, %143 : vector<8x256xf32>
    %c16_i32_61 = arith.constant 16 : i32
    %145 = tpu.dynamic_rotate %139 by %c16_i32_61 dim 1 : vector<8x256xf32>, i32 -> vector<8x256xf32>
    %146 = vector.extract_strided_slice %0 {offsets = [1, 0], sizes = [1, 256], strides = [1, 1]} : vector<9x256xf32> to vector<1x256xf32>
    %147 = vector.broadcast %146 : vector<1x256xf32> to vector<8x256xf32>
    %148 = arith.mulf %145, %147 : vector<8x256xf32>
    %c15_i32_62 = arith.constant 15 : i32
    %149 = tpu.dynamic_rotate %139 by %c15_i32_62 dim 1 : vector<8x256xf32>, i32 -> vector<8x256xf32>
    %150 = vector.extract_strided_slice %0 {offsets = [2, 0], sizes = [1, 256], strides = [1, 1]} : vector<9x256xf32> to vector<1x256xf32>
    %151 = vector.broadcast %150 : vector<1x256xf32> to vector<8x256xf32>
    %152 = arith.mulf %149, %151 : vector<8x256xf32>
    %c1_i32_63 = arith.constant 1 : i32
    %153 = tpu.dynamic_rotate %139 by %c1_i32_63 dim 1 : vector<8x256xf32>, i32 -> vector<8x256xf32>
    %154 = vector.extract_strided_slice %0 {offsets = [3, 0], sizes = [1, 256], strides = [1, 1]} : vector<9x256xf32> to vector<1x256xf32>
    %155 = vector.broadcast %154 : vector<1x256xf32> to vector<8x256xf32>
    %156 = arith.mulf %153, %155 : vector<8x256xf32>
    %c255_i32_64 = arith.constant 255 : i32
    %157 = tpu.dynamic_rotate %139 by %c255_i32_64 dim 1 : vector<8x256xf32>, i32 -> vector<8x256xf32>
    %158 = vector.extract_strided_slice %0 {offsets = [5, 0], sizes = [1, 256], strides = [1, 1]} : vector<9x256xf32> to vector<1x256xf32>
    %159 = vector.broadcast %158 : vector<1x256xf32> to vector<8x256xf32>
    %160 = arith.mulf %157, %159 : vector<8x256xf32>
    %c241_i32_65 = arith.constant 241 : i32
    %161 = tpu.dynamic_rotate %139 by %c241_i32_65 dim 1 : vector<8x256xf32>, i32 -> vector<8x256xf32>
    %162 = vector.extract_strided_slice %0 {offsets = [6, 0], sizes = [1, 256], strides = [1, 1]} : vector<9x256xf32> to vector<1x256xf32>
    %163 = vector.broadcast %162 : vector<1x256xf32> to vector<8x256xf32>
    %164 = arith.mulf %161, %163 : vector<8x256xf32>
    %c240_i32_66 = arith.constant 240 : i32
    %165 = tpu.dynamic_rotate %139 by %c240_i32_66 dim 1 : vector<8x256xf32>, i32 -> vector<8x256xf32>
    %166 = vector.extract_strided_slice %0 {offsets = [7, 0], sizes = [1, 256], strides = [1, 1]} : vector<9x256xf32> to vector<1x256xf32>
    %167 = vector.broadcast %166 : vector<1x256xf32> to vector<8x256xf32>
    %168 = arith.mulf %165, %167 : vector<8x256xf32>
    %c239_i32_67 = arith.constant 239 : i32
    %169 = tpu.dynamic_rotate %139 by %c239_i32_67 dim 1 : vector<8x256xf32>, i32 -> vector<8x256xf32>
    %170 = vector.extract_strided_slice %0 {offsets = [8, 0], sizes = [1, 256], strides = [1, 1]} : vector<9x256xf32> to vector<1x256xf32>
    %171 = vector.broadcast %170 : vector<1x256xf32> to vector<8x256xf32>
    %172 = arith.mulf %169, %171 : vector<8x256xf32>
    %173 = tpu.concatenate %144, %148, %152, %156, %139, %160, %164, %168, %172 in 0 : vector<8x256xf32>, vector<8x256xf32>, vector<8x256xf32>, vector<8x256xf32>, vector<8x256xf32>, vector<8x256xf32>, vector<8x256xf32>, vector<8x256xf32>, vector<8x256xf32> -> vector<72x256xf32>
    %174 = arith.truncf %140 : vector<8x72xf32> to vector<8x72xbf16>
    %175 = arith.truncf %173 : vector<72x256xf32> to vector<72x256xbf16>
    %cst_68 = arith.constant dense<0.000000e+00> : vector<8x256xf32>
    %176 = tpu.matmul %174, %175, %cst_68 {dimension_numbers = #tpu.dot_dimension_numbers<[1], [0], [0], [1], [0, 0, 1, 1], [], []>} : vector<8x72xbf16>, vector<72x256xbf16>, vector<8x256xf32> -> vector<8x256xf32>
    %c0_69 = arith.constant 0 : index
    %c0_70 = arith.constant 0 : index
    %177 = vector.load %arg19[%c0_69, %c0_70] : memref<8x1xf32, #tpu.memory_space<vmem>>, vector<8x1xf32>
    %178 = vector.broadcast %177 : vector<8x1xf32> to vector<8x256xf32>
    %179 = arith.mulf %176, %178 : vector<8x256xf32>
    %c0_71 = arith.constant 0 : index
    %c0_72 = arith.constant 0 : index
    %180 = vector.load %arg20[%c0_71, %c0_72] : memref<8x1xf32, #tpu.memory_space<vmem>>, vector<8x1xf32>
    %181 = vector.broadcast %180 : vector<8x1xf32> to vector<8x256xf32>
    %182 = arith.addf %179, %181 : vector<8x256xf32>
    %cst_73 = arith.constant 0.000000e+00 : f32
    %183 = vector.broadcast %cst_73 : f32 to vector<8x256xf32>
    %184 = arith.maximumf %182, %183 : vector<8x256xf32>
    %c0_74 = arith.constant 0 : index
    %c0_75 = arith.constant 0 : index
    %185 = vector.load %arg21[%c0_74, %c0_75] : memref<4x8xf32, #tpu.memory_space<vmem>>, vector<4x8xf32>
    %186 = arith.truncf %185 : vector<4x8xf32> to vector<4x8xbf16>
    %187 = arith.truncf %184 : vector<8x256xf32> to vector<8x256xbf16>
    %cst_76 = arith.constant dense<0.000000e+00> : vector<4x256xf32>
    %188 = tpu.matmul %186, %187, %cst_76 {dimension_numbers = #tpu.dot_dimension_numbers<[1], [0], [0], [1], [0, 0, 1, 1], [], []>} : vector<4x8xbf16>, vector<8x256xbf16>, vector<4x256xf32> -> vector<4x256xf32>
    %c0_77 = arith.constant 0 : index
    %c0_78 = arith.constant 0 : index
    %189 = vector.load %arg22[%c0_77, %c0_78] : memref<4x1xf32, #tpu.memory_space<vmem>>, vector<4x1xf32>
    %190 = vector.broadcast %189 : vector<4x1xf32> to vector<4x256xf32>
    %191 = arith.mulf %188, %190 : vector<4x256xf32>
    %c0_79 = arith.constant 0 : index
    %c0_80 = arith.constant 0 : index
    %192 = vector.load %arg23[%c0_79, %c0_80] : memref<4x1xf32, #tpu.memory_space<vmem>>, vector<4x1xf32>
    %193 = vector.broadcast %192 : vector<4x1xf32> to vector<4x256xf32>
    %194 = arith.addf %191, %193 : vector<4x256xf32>
    %cst_81 = arith.constant 0.000000e+00 : f32
    %195 = vector.broadcast %cst_81 : f32 to vector<4x256xf32>
    %196 = arith.maximumf %194, %195 : vector<4x256xf32>
    %197 = vector.extract_strided_slice %2 {offsets = [0, 0], sizes = [4, 256], strides = [1, 1]} : vector<8x256xf32> to vector<4x256xf32>
    %198 = arith.addf %196, %197 : vector<4x256xf32>
    %c0_82 = arith.constant 0 : index
    %c0_83 = arith.constant 0 : index
    %199 = vector.load %arg24[%c0_82, %c0_83] : memref<4x4xf32, #tpu.memory_space<vmem>>, vector<4x4xf32>
    %200 = arith.truncf %199 : vector<4x4xf32> to vector<4x4xbf16>
    %201 = arith.truncf %198 : vector<4x256xf32> to vector<4x256xbf16>
    %cst_84 = arith.constant dense<0.000000e+00> : vector<4x256xf32>
    %202 = tpu.matmul %200, %201, %cst_84 {dimension_numbers = #tpu.dot_dimension_numbers<[1], [0], [0], [1], [0, 0, 1, 1], [], []>} : vector<4x4xbf16>, vector<4x256xbf16>, vector<4x256xf32> -> vector<4x256xf32>
    %c0_85 = arith.constant 0 : index
    %c0_86 = arith.constant 0 : index
    %203 = vector.load %arg25[%c0_85, %c0_86] : memref<4x1xf32, #tpu.memory_space<vmem>>, vector<4x1xf32>
    %204 = vector.broadcast %203 : vector<4x1xf32> to vector<4x256xf32>
    %205 = arith.addf %202, %204 : vector<4x256xf32>
    %c0_87 = arith.constant 0 : index
    %c0_88 = arith.constant 0 : index
    %c0_89 = arith.constant 0 : index
    %206 = vector.load %arg26[%c0_87, %c0_88, %c0_89] : memref<1x4x256xf32, #tpu.memory_space<vmem>>, vector<1x4x256xf32>
    %207 = vector.shape_cast %206 : vector<1x4x256xf32> to vector<4x256xf32>
    %208 = vector.shape_cast %205 : vector<4x256xf32> to vector<1x4x256xf32>
    tpu.vector_store %arg26[%c0_87, %c0_88, %c0_89], %208 {strides = array<i32>} : memref<1x4x256xf32, #tpu.memory_space<vmem>>, vector<1x4x256xf32>,
    return
  }
  func.func @transform_0(%arg0: i32) -> (i32, i32) {
    %c0_i32 = arith.constant 0 : i32
    %c0_i32_0 = arith.constant 0 : i32
    %c0_i32_1 = arith.constant 0 : i32
    return %c0_i32, %c0_i32_0 : i32, i32
  }
  func.func @transform_1(%arg0: i32) -> (i32, i32, i32) {
    %c0_i32 = arith.constant 0 : i32
    %c0_i32_0 = arith.constant 0 : i32
    %c0_i32_1 = arith.constant 0 : i32
    return %arg0, %c0_i32, %c0_i32_0 : i32, i32, i32
  }
  func.func @transform_2(%arg0: i32) -> (i32, i32, i32) {
    %c0_i32 = arith.constant 0 : i32
    %c0_i32_0 = arith.constant 0 : i32
    %c0_i32_1 = arith.constant 0 : i32
    return %arg0, %c0_i32, %c0_i32_0 : i32, i32, i32
  }
  func.func @transform_3(%arg0: i32) -> (i32, i32) {
    %c0_i32 = arith.constant 0 : i32
    %c0_i32_0 = arith.constant 0 : i32
    %c0_i32_1 = arith.constant 0 : i32
    return %c0_i32, %c0_i32_0 : i32, i32
  }
  func.func @transform_4(%arg0: i32) -> (i32, i32) {
    %c0_i32 = arith.constant 0 : i32
    %c0_i32_0 = arith.constant 0 : i32
    %c0_i32_1 = arith.constant 0 : i32
    return %c0_i32, %c0_i32_0 : i32, i32
  }
  func.func @transform_5(%arg0: i32) -> (i32, i32) {
    %c0_i32 = arith.constant 0 : i32
    %c0_i32_0 = arith.constant 0 : i32
    %c0_i32_1 = arith.constant 0 : i32
    return %c0_i32, %c0_i32_0 : i32, i32
  }
  func.func @transform_6(%arg0: i32) -> (i32, i32) {
    %c0_i32 = arith.constant 0 : i32
    %c0_i32_0 = arith.constant 0 : i32
    %c0_i32_1 = arith.constant 0 : i32
    return %c0_i32, %c0_i32_0 : i32, i32
  }
  func.func @transform_7(%arg0: i32) -> (i32, i32) {
    %c0_i32 = arith.constant 0 : i32
    %c0_i32_0 = arith.constant 0 : i32
    %c0_i32_1 = arith.constant 0 : i32
    return %c0_i32, %c0_i32_0 : i32, i32
  }
  func.func @transform_8(%arg0: i32) -> (i32, i32) {
    %c0_i32 = arith.constant 0 : i32
    %c0_i32_0 = arith.constant 0 : i32
    %c0_i32_1 = arith.constant 0 : i32
    return %c0_i32, %c0_i32_0 : i32, i32
  }
  func.func @transform_9(%arg0: i32) -> (i32, i32) {
    %c0_i32 = arith.constant 0 : i32
    %c0_i32_0 = arith.constant 0 : i32
    %c0_i32_1 = arith.constant 0 : i32
    return %c0_i32, %c0_i32_0 : i32, i32
  }
  func.func @transform_10(%arg0: i32) -> (i32, i32) {
    %c0_i32 = arith.constant 0 : i32
    %c0_i32_0 = arith.constant 0 : i32
    %c0_i32_1 = arith.constant 0 : i32
    return %c0_i32, %c0_i32_0 : i32, i32
  }
  func.func @transform_11(%arg0: i32) -> (i32, i32) {
    %c0_i32 = arith.constant 0 : i32
    %c0_i32_0 = arith.constant 0 : i32
    %c0_i32_1 = arith.constant 0 : i32
    return %c0_i32, %c0_i32_0 : i32, i32
  }
  func.func @transform_12(%arg0: i32) -> (i32, i32) {
    %c0_i32 = arith.constant 0 : i32
    %c0_i32_0 = arith.constant 0 : i32
    %c0_i32_1 = arith.constant 0 : i32
    return %c0_i32, %c0_i32_0 : i32, i32
  }
  func.func @transform_13(%arg0: i32) -> (i32, i32) {
    %c0_i32 = arith.constant 0 : i32
    %c0_i32_0 = arith.constant 0 : i32
    %c0_i32_1 = arith.constant 0 : i32
    return %c0_i32, %c0_i32_0 : i32, i32
  }
  func.func @transform_14(%arg0: i32) -> (i32, i32) {
    %c0_i32 = arith.constant 0 : i32
    %c0_i32_0 = arith.constant 0 : i32
    %c0_i32_1 = arith.constant 0 : i32
    return %c0_i32, %c0_i32_0 : i32, i32
  }
  func.func @transform_15(%arg0: i32) -> (i32, i32) {
    %c0_i32 = arith.constant 0 : i32
    %c0_i32_0 = arith.constant 0 : i32
    %c0_i32_1 = arith.constant 0 : i32
    return %c0_i32, %c0_i32_0 : i32, i32
  }
  func.func @transform_16(%arg0: i32) -> (i32, i32) {
    %c0_i32 = arith.constant 0 : i32
    %c0_i32_0 = arith.constant 0 : i32
    %c0_i32_1 = arith.constant 0 : i32
    return %c0_i32, %c0_i32_0 : i32, i32
  }
  func.func @transform_17(%arg0: i32) -> (i32, i32) {
    %c0_i32 = arith.constant 0 : i32
    %c0_i32_0 = arith.constant 0 : i32
    %c0_i32_1 = arith.constant 0 : i32
    return %c0_i32, %c0_i32_0 : i32, i32
  }
  func.func @transform_18(%arg0: i32) -> (i32, i32) {
    %c0_i32 = arith.constant 0 : i32
    %c0_i32_0 = arith.constant 0 : i32
    %c0_i32_1 = arith.constant 0 : i32
    return %c0_i32, %c0_i32_0 : i32, i32
  }
  func.func @transform_19(%arg0: i32) -> (i32, i32) {
    %c0_i32 = arith.constant 0 : i32
    %c0_i32_0 = arith.constant 0 : i32
    %c0_i32_1 = arith.constant 0 : i32
    return %c0_i32, %c0_i32_0 : i32, i32
  }
  func.func @transform_20(%arg0: i32) -> (i32, i32) {
    %c0_i32 = arith.constant 0 : i32
    %c0_i32_0 = arith.constant 0 : i32
    %c0_i32_1 = arith.constant 0 : i32
    return %c0_i32, %c0_i32_0 : i32, i32
  }
  func.func @transform_21(%arg0: i32) -> (i32, i32) {
    %c0_i32 = arith.constant 0 : i32
    %c0_i32_0 = arith.constant 0 : i32
    %c0_i32_1 = arith.constant 0 : i32
    return %c0_i32, %c0_i32_0 : i32, i32
  }
  func.func @transform_22(%arg0: i32) -> (i32, i32) {
    %c0_i32 = arith.constant 0 : i32
    %c0_i32_0 = arith.constant 0 : i32
    %c0_i32_1 = arith.constant 0 : i32
    return %c0_i32, %c0_i32_0 : i32, i32
  }
  func.func @transform_23(%arg0: i32) -> (i32, i32) {
    %c0_i32 = arith.constant 0 : i32
    %c0_i32_0 = arith.constant 0 : i32
    %c0_i32_1 = arith.constant 0 : i32
    return %c0_i32, %c0_i32_0 : i32, i32
  }
  func.func @transform_24(%arg0: i32) -> (i32, i32) {
    %c0_i32 = arith.constant 0 : i32
    %c0_i32_0 = arith.constant 0 : i32
    %c0_i32_1 = arith.constant 0 : i32
    return %c0_i32, %c0_i32_0 : i32, i32
  }
  func.func @transform_25(%arg0: i32) -> (i32, i32, i32) {
    %c0_i32 = arith.constant 0 : i32
    %c0_i32_0 = arith.constant 0 : i32
    %c0_i32_1 = arith.constant 0 : i32
    return %arg0, %c0_i32, %c0_i32_0 : i32, i32, i32
  }
}

</mosaic_0001>

<llo_original>
// kernel: guided_upsampling_block.1
$region0: #{guided_upsampling_block.1}
  #allocation0 [shape = 'u32[]', space=smem, size = 0x4, offset = 0x4, fixed_abs, tag = 'smem constant byte address 0x4 - core index']
  #allocation1 [shape = 'u32[144,128]{1,0:T(1,128)}', space=vmem, size = 0x12000, scoped, tag = 'internal scratch']
  %s0 = inlined_call_operand.vmem [shape: f32[9,256], index: 0, kind: input, shape index: {}]
  %s1 = inlined_call_operand.vmem [shape: f32[2,8,256], index: 1, kind: input, shape index: {}]
  %s2 = inlined_call_operand.vmem [shape: f32[2,8,256], index: 2, kind: input, shape index: {}]
  %s3 = inlined_call_operand.vmem [shape: f32[8,72], index: 3, kind: input, shape index: {}]
  %s4 = inlined_call_operand.vmem [shape: f32[8,1], index: 4, kind: input, shape index: {}]
  %s5 = inlined_call_operand.vmem [shape: f32[8,1], index: 5, kind: input, shape index: {}]
  %s6 = inlined_call_operand.vmem [shape: f32[8,8], index: 6, kind: input, shape index: {}]
  %s7 = inlined_call_operand.vmem [shape: f32[8,1], index: 7, kind: input, shape index: {}]
  %s8 = inlined_call_operand.vmem [shape: f32[8,1], index: 8, kind: input, shape index: {}]
  %s9 = inlined_call_operand.vmem [shape: f32[8,72], index: 9, kind: input, shape index: {}]
  %s10 = inlined_call_operand.vmem [shape: f32[8,1], index: 10, kind: input, shape index: {}]
  %s11 = inlined_call_operand.vmem [shape: f32[8,1], index: 11, kind: input, shape index: {}]
  %s12 = inlined_call_operand.vmem [shape: f32[8,8], index: 12, kind: input, shape index: {}]
  %s13 = inlined_call_operand.vmem [shape: f32[8,1], index: 13, kind: input, shape index: {}]
  %s14 = inlined_call_operand.vmem [shape: f32[8,1], index: 14, kind: input, shape index: {}]
  %s15 = inlined_call_operand.vmem [shape: f32[8,8], index: 15, kind: input, shape index: {}]
  %s16 = inlined_call_operand.vmem [shape: f32[8,8], index: 16, kind: input, shape index: {}]
  %s17 = inlined_call_operand.vmem [shape: f32[8,72], index: 17, kind: input, shape index: {}]
  %s18 = inlined_call_operand.vmem [shape: f32[8,1], index: 18, kind: input, shape index: {}]
  %s19 = inlined_call_operand.vmem [shape: f32[8,1], index: 19, kind: input, shape index: {}]
  %s20 = inlined_call_operand.vmem [shape: f32[4,8], index: 20, kind: input, shape index: {}]
  %s21 = inlined_call_operand.vmem [shape: f32[4,1], index: 21, kind: input, shape index: {}]
  %s22 = inlined_call_operand.vmem [shape: f32[4,1], index: 22, kind: input, shape index: {}]
  %s23 = inlined_call_operand.vmem [shape: f32[4,4], index: 23, kind: input, shape index: {}]
  %s24 = inlined_call_operand.vmem [shape: f32[4,1], index: 24, kind: input, shape index: {}]
  %s25 = inlined_call_operand.vmem [shape: f32[2,4,256], index: 25, kind: output, shape index: {}]
  %s26 = sld [smem:[#allocation0]]
  $region133: #{guided_upsampling_block.1} parent=0
    _
  %s28 = ssub.s32 1, %s26
  %s29 = scalar_select 0, %s28, %s26
  loop: start=0, step=1, limit=4
  $region2: #{guided_upsampling_block.1} parent=0 // loop_pre_header
    _
  $region3: #{guided_upsampling_block.1} parent=0 // loop_header
    %s31 = sphi 0, %s35
    %p32 = scmp.ge.s32.totalorder %s31, 4
    %s39 = sphi 0, %s39
    %s41 = sphi 0, %s39
    %s42 = sphi 0, %s41
    %s56 = sphi 0, %s42
    %s62 = sphi 0, %s64
    %s65 = sphi 0, %s62
    %s66 = sphi 0, %s65
    %s82 = sphi 0, %s66
    %s88 = sphi 0, %s90
    %s91 = sphi 0, %s88
    %s92 = sphi 0, %s91
    %s108 = sphi 0, %s92
    %s112 = sphi 0, %s112
    %s114 = sphi 0, %s112
    %s115 = sphi 0, %s114
    %s129 = sphi 0, %s115
    %s133 = sphi 0, %s133
    %s135 = sphi 0, %s133
    %s136 = sphi 0, %s135
    %s150 = sphi 0, %s136
    %s154 = sphi 0, %s154
    %s156 = sphi 0, %s154
    %s157 = sphi 0, %s156
    %s171 = sphi 0, %s157
    %s175 = sphi 0, %s175
    %s177 = sphi 0, %s175
    %s178 = sphi 0, %s177
    %s192 = sphi 0, %s178
    %s196 = sphi 0, %s196
    %s198 = sphi 0, %s196
    %s199 = sphi 0, %s198
    %s213 = sphi 0, %s199
    %s217 = sphi 0, %s217
    %s219 = sphi 0, %s217
    %s220 = sphi 0, %s219
    %s234 = sphi 0, %s220
    %s238 = sphi 0, %s238
    %s240 = sphi 0, %s238
    %s241 = sphi 0, %s240
    %s255 = sphi 0, %s241
    %s259 = sphi 0, %s259
    %s261 = sphi 0, %s259
    %s262 = sphi 0, %s261
    %s276 = sphi 0, %s262
    %s280 = sphi 0, %s280
    %s282 = sphi 0, %s280
    %s283 = sphi 0, %s282
    %s297 = sphi 0, %s283
    %s301 = sphi 0, %s301
    %s303 = sphi 0, %s301
    %s304 = sphi 0, %s303
    %s318 = sphi 0, %s304
    %s322 = sphi 0, %s322
    %s324 = sphi 0, %s322
    %s325 = sphi 0, %s324
    %s339 = sphi 0, %s325
    %s343 = sphi 0, %s343
    %s345 = sphi 0, %s343
    %s346 = sphi 0, %s345
    %s360 = sphi 0, %s346
    %s364 = sphi 0, %s364
    %s366 = sphi 0, %s364
    %s367 = sphi 0, %s366
    %s381 = sphi 0, %s367
    %s385 = sphi 0, %s385
    %s387 = sphi 0, %s385
    %s388 = sphi 0, %s387
    %s402 = sphi 0, %s388
    %s406 = sphi 0, %s406
    %s408 = sphi 0, %s406
    %s409 = sphi 0, %s408
    %s423 = sphi 0, %s409
    %s427 = sphi 0, %s427
    %s429 = sphi 0, %s427
    %s430 = sphi 0, %s429
    %s444 = sphi 0, %s430
    %s448 = sphi 0, %s448
    %s450 = sphi 0, %s448
    %s451 = sphi 0, %s450
    %s465 = sphi 0, %s451
    %s469 = sphi 0, %s469
    %s471 = sphi 0, %s469
    %s472 = sphi 0, %s471
    %s486 = sphi 0, %s472
    %s490 = sphi 0, %s490
    %s492 = sphi 0, %s490
    %s493 = sphi 0, %s492
    %s507 = sphi 0, %s493
    %s511 = sphi 0, %s511
    %s513 = sphi 0, %s511
    %s514 = sphi 0, %s513
    %s528 = sphi 0, %s514
    %s532 = sphi 0, %s532
    %s534 = sphi 0, %s532
    %s535 = sphi 0, %s534
    %s549 = sphi 0, %s535
    %s553 = sphi 0, %s553
    %s555 = sphi 0, %s553
    %s556 = sphi 0, %s555
    %s570 = sphi 0, %s556
    %s576 = sphi 0, %s578
    %s579 = sphi 0, %s576
    %s580 = sphi 0, %s579
    %s596 = sphi 0, %s580
  $region4: #{guided_upsampling_block.1} parent=0 // loop_header_branch
    %34 = sbr.rel (%p32) target = $region8
  $region5: #{guided_upsampling_block.1} parent=0 // loop_body
    %s36 = ssub.s32 %s31, 1
    %s37 = ssub.s32 %s31, 2
    %s38 = sadd.s32 %s31, 1
    %s40 = sadd.s32 %s39, 1
    %p43 = scmp.eq.s32.totalorder %s31, 1
    %p44 = scmp.ne.s32.totalorder %s39, %s41
    %p45 = scmp.eq.s32.totalorder %s31, 0
    %p46 = por %p44, %p45
    %p47 = scmp.ne.s32.totalorder %s39, %s41
    %p48 = scmp.eq.s32.totalorder %s36, 1
    %p49 = por %p47, %p48
    %p50 = scmp.ne.s32.totalorder %s41, %s42
    %p51 = scmp.eq.s32.totalorder %s36, 0
    %p52 = por %p50, %p51
    %p53 = scmp.ne.s32.totalorder %s41, %s42
    %p54 = scmp.eq.s32.totalorder %s37, 1
    %p55 = por %p53, %p54
    %p57 = scmp.ne.s32.totalorder %s42, %s56
    %p58 = scmp.eq.s32.totalorder %s37, 0
    %p59 = por %p57, %p58
    %s60 = ssub.s32 %s31, %s38
    %p61 = scmp.eq.s32.totalorder %s60, 0
    %s63 = sadd.s32 %s62, 1
    %s64 = scalar_select %p61, %s62, %s63
    %p67 = pneg %p61
    %p68 = scmp.eq.s32.totalorder %s31, 1
    %p69 = por %p67, %p68
    %p70 = scmp.ne.s32.totalorder %s62, %s65
    %p71 = scmp.eq.s32.totalorder %s31, 0
    %p72 = por %p70, %p71
    %p73 = scmp.ne.s32.totalorder %s62, %s65
    %p74 = scmp.eq.s32.totalorder %s36, 1
    %p75 = por %p73, %p74
    %p76 = scmp.ne.s32.totalorder %s65, %s66
    %p77 = scmp.eq.s32.totalorder %s36, 0
    %p78 = por %p76, %p77
    %p79 = scmp.ne.s32.totalorder %s65, %s66
    %p80 = scmp.eq.s32.totalorder %s37, 1
    %p81 = por %p79, %p80
    %p83 = scmp.ne.s32.totalorder %s66, %s82
    %p84 = scmp.eq.s32.totalorder %s37, 0
    %p85 = por %p83, %p84
    %s86 = ssub.s32 %s31, %s38
    %p87 = scmp.eq.s32.totalorder %s86, 0
    %s89 = sadd.s32 %s88, 1
    %s90 = scalar_select %p87, %s88, %s89
    %p93 = pneg %p87
    %p94 = scmp.eq.s32.totalorder %s31, 1
    %p95 = por %p93, %p94
    %p96 = scmp.ne.s32.totalorder %s88, %s91
    %p97 = scmp.eq.s32.totalorder %s31, 0
    %p98 = por %p96, %p97
    %p99 = scmp.ne.s32.totalorder %s88, %s91
    %p100 = scmp.eq.s32.totalorder %s36, 1
    %p101 = por %p99, %p100
    %p102 = scmp.ne.s32.totalorder %s91, %s92
    %p103 = scmp.eq.s32.totalorder %s36, 0
    %p104 = por %p102, %p103
    %p105 = scmp.ne.s32.totalorder %s91, %s92
    %p106 = scmp.eq.s32.totalorder %s37, 1
    %p107 = por %p105, %p106
    %p109 = scmp.ne.s32.totalorder %s92, %s108
    %p110 = scmp.eq.s32.totalorder %s37, 0
    %p111 = por %p109, %p110
    %s113 = sadd.s32 %s112, 1
    %p116 = scmp.eq.s32.totalorder %s31, 1
    %p117 = scmp.ne.s32.totalorder %s112, %s114
    %p118 = scmp.eq.s32.totalorder %s31, 0
    %p119 = por %p117, %p118
    %p120 = scmp.ne.s32.totalorder %s112, %s114
    %p121 = scmp.eq.s32.totalorder %s36, 1
    %p122 = por %p120, %p121
    %p123 = scmp.ne.s32.totalorder %s114, %s115
    %p124 = scmp.eq.s32.totalorder %s36, 0
    %p125 = por %p123, %p124
    %p126 = scmp.ne.s32.totalorder %s114, %s115
    %p127 = scmp.eq.s32.totalorder %s37, 1
    %p128 = por %p126, %p127
    %p130 = scmp.ne.s32.totalorder %s115, %s129
    %p131 = scmp.eq.s32.totalorder %s37, 0
    %p132 = por %p130, %p131
    %s134 = sadd.s32 %s133, 1
    %p137 = scmp.eq.s32.totalorder %s31, 1
    %p138 = scmp.ne.s32.totalorder %s133, %s135
    %p139 = scmp.eq.s32.totalorder %s31, 0
    %p140 = por %p138, %p139
    %p141 = scmp.ne.s32.totalorder %s133, %s135
    %p142 = scmp.eq.s32.totalorder %s36, 1
    %p143 = por %p141, %p142
    %p144 = scmp.ne.s32.totalorder %s135, %s136
    %p145 = scmp.eq.s32.totalorder %s36, 0
    %p146 = por %p144, %p145
    %p147 = scmp.ne.s32.totalorder %s135, %s136
    %p148 = scmp.eq.s32.totalorder %s37, 1
    %p149 = por %p147, %p148
    %p151 = scmp.ne.s32.totalorder %s136, %s150
    %p152 = scmp.eq.s32.totalorder %s37, 0
    %p153 = por %p151, %p152
    %s155 = sadd.s32 %s154, 1
    %p158 = scmp.eq.s32.totalorder %s31, 1
    %p159 = scmp.ne.s32.totalorder %s154, %s156
    %p160 = scmp.eq.s32.totalorder %s31, 0
    %p161 = por %p159, %p160
    %p162 = scmp.ne.s32.totalorder %s154, %s156
    %p163 = scmp.eq.s32.totalorder %s36, 1
    %p164 = por %p162, %p163
    %p165 = scmp.ne.s32.totalorder %s156, %s157
    %p166 = scmp.eq.s32.totalorder %s36, 0
    %p167 = por %p165, %p166
    %p168 = scmp.ne.s32.totalorder %s156, %s157
    %p169 = scmp.eq.s32.totalorder %s37, 1
    %p170 = por %p168, %p169
    %p172 = scmp.ne.s32.totalorder %s157, %s171
    %p173 = scmp.eq.s32.totalorder %s37, 0
    %p174 = por %p172, %p173
    %s176 = sadd.s32 %s175, 1
    %p179 = scmp.eq.s32.totalorder %s31, 1
    %p180 = scmp.ne.s32.totalorder %s175, %s177
    %p181 = scmp.eq.s32.totalorder %s31, 0
    %p182 = por %p180, %p181
    %p183 = scmp.ne.s32.totalorder %s175, %s177
    %p184 = scmp.eq.s32.totalorder %s36, 1
    %p185 = por %p183, %p184
    %p186 = scmp.ne.s32.totalorder %s177, %s178
    %p187 = scmp.eq.s32.totalorder %s36, 0
    %p188 = por %p186, %p187
    %p189 = scmp.ne.s32.totalorder %s177, %s178
    %p190 = scmp.eq.s32.totalorder %s37, 1
    %p191 = por %p189, %p190
    %p193 = scmp.ne.s32.totalorder %s178, %s192
    %p194 = scmp.eq.s32.totalorder %s37, 0
    %p195 = por %p193, %p194
    %s197 = sadd.s32 %s196, 1
    %p200 = scmp.eq.s32.totalorder %s31, 1
    %p201 = scmp.ne.s32.totalorder %s196, %s198
    %p202 = scmp.eq.s32.totalorder %s31, 0
    %p203 = por %p201, %p202
    %p204 = scmp.ne.s32.totalorder %s196, %s198
    %p205 = scmp.eq.s32.totalorder %s36, 1
    %p206 = por %p204, %p205
    %p207 = scmp.ne.s32.totalorder %s198, %s199
    %p208 = scmp.eq.s32.totalorder %s36, 0
    %p209 = por %p207, %p208
    %p210 = scmp.ne.s32.totalorder %s198, %s199
    %p211 = scmp.eq.s32.totalorder %s37, 1
    %p212 = por %p210, %p211
    %p214 = scmp.ne.s32.totalorder %s199, %s213
    %p215 = scmp.eq.s32.totalorder %s37, 0
    %p216 = por %p214, %p215
    %s218 = sadd.s32 %s217, 1
    %p221 = scmp.eq.s32.totalorder %s31, 1
    %p222 = scmp.ne.s32.totalorder %s217, %s219
    %p223 = scmp.eq.s32.totalorder %s31, 0
    %p224 = por %p222, %p223
    %p225 = scmp.ne.s32.totalorder %s217, %s219
    %p226 = scmp.eq.s32.totalorder %s36, 1
    %p227 = por %p225, %p226
    %p228 = scmp.ne.s32.totalorder %s219, %s220
    %p229 = scmp.eq.s32.totalorder %s36, 0
    %p230 = por %p228, %p229
    %p231 = scmp.ne.s32.totalorder %s219, %s220
    %p232 = scmp.eq.s32.totalorder %s37, 1
    %p233 = por %p231, %p232
    %p235 = scmp.ne.s32.totalorder %s220, %s234
    %p236 = scmp.eq.s32.totalorder %s37, 0
    %p237 = por %p235, %p236
    %s239 = sadd.s32 %s238, 1
    %p242 = scmp.eq.s32.totalorder %s31, 1
    %p243 = scmp.ne.s32.totalorder %s238, %s240
    %p244 = scmp.eq.s32.totalorder %s31, 0
    %p245 = por %p243, %p244
    %p246 = scmp.ne.s32.totalorder %s238, %s240
    %p247 = scmp.eq.s32.totalorder %s36, 1
    %p248 = por %p246, %p247
    %p249 = scmp.ne.s32.totalorder %s240, %s241
    %p250 = scmp.eq.s32.totalorder %s36, 0
    %p251 = por %p249, %p250
    %p252 = scmp.ne.s32.totalorder %s240, %s241
    %p253 = scmp.eq.s32.totalorder %s37, 1
    %p254 = por %p252, %p253
    %p256 = scmp.ne.s32.totalorder %s241, %s255
    %p257 = scmp.eq.s32.totalorder %s37, 0
    %p258 = por %p256, %p257
    %s260 = sadd.s32 %s259, 1
    %p263 = scmp.eq.s32.totalorder %s31, 1
    %p264 = scmp.ne.s32.totalorder %s259, %s261
    %p265 = scmp.eq.s32.totalorder %s31, 0
    %p266 = por %p264, %p265
    %p267 = scmp.ne.s32.totalorder %s259, %s261
    %p268 = scmp.eq.s32.totalorder %s36, 1
    %p269 = por %p267, %p268
    %p270 = scmp.ne.s32.totalorder %s261, %s262
    %p271 = scmp.eq.s32.totalorder %s36, 0
    %p272 = por %p270, %p271
    %p273 = scmp.ne.s32.totalorder %s261, %s262
    %p274 = scmp.eq.s32.totalorder %s37, 1
    %p275 = por %p273, %p274
    %p277 = scmp.ne.s32.totalorder %s262, %s276
    %p278 = scmp.eq.s32.totalorder %s37, 0
    %p279 = por %p277, %p278
    %s281 = sadd.s32 %s280, 1
    %p284 = scmp.eq.s32.totalorder %s31, 1
    %p285 = scmp.ne.s32.totalorder %s280, %s282
    %p286 = scmp.eq.s32.totalorder %s31, 0
    %p287 = por %p285, %p286
    %p288 = scmp.ne.s32.totalorder %s280, %s282
    %p289 = scmp.eq.s32.totalorder %s36, 1
    %p290 = por %p288, %p289
    %p291 = scmp.ne.s32.totalorder %s282, %s283
    %p292 = scmp.eq.s32.totalorder %s36, 0
    %p293 = por %p291, %p292
    %p294 = scmp.ne.s32.totalorder %s282, %s283
    %p295 = scmp.eq.s32.totalorder %s37, 1
    %p296 = por %p294, %p295
    %p298 = scmp.ne.s32.totalorder %s283, %s297
    %p299 = scmp.eq.s32.totalorder %s37, 0
    %p300 = por %p298, %p299
    %s302 = sadd.s32 %s301, 1
    %p305 = scmp.eq.s32.totalorder %s31, 1
    %p306 = scmp.ne.s32.totalorder %s301, %s303
    %p307 = scmp.eq.s32.totalorder %s31, 0
    %p308 = por %p306, %p307
    %p309 = scmp.ne.s32.totalorder %s301, %s303
    %p310 = scmp.eq.s32.totalorder %s36, 1
    %p311 = por %p309, %p310
    %p312 = scmp.ne.s32.totalorder %s303, %s304
    %p313 = scmp.eq.s32.totalorder %s36, 0
    %p314 = por %p312, %p313
    %p315 = scmp.ne.s32.totalorder %s303, %s304
    %p316 = scmp.eq.s32.totalorder %s37, 1
    %p317 = por %p315, %p316
    %p319 = scmp.ne.s32.totalorder %s304, %s318
    %p320 = scmp.eq.s32.totalorder %s37, 0
    %p321 = por %p319, %p320
    %s323 = sadd.s32 %s322, 1
    %p326 = scmp.eq.s32.totalorder %s31, 1
    %p327 = scmp.ne.s32.totalorder %s322, %s324
    %p328 = scmp.eq.s32.totalorder %s31, 0
    %p329 = por %p327, %p328
    %p330 = scmp.ne.s32.totalorder %s322, %s324
    %p331 = scmp.eq.s32.totalorder %s36, 1
    %p332 = por %p330, %p331
    %p333 = scmp.ne.s32.totalorder %s324, %s325
    %p334 = scmp.eq.s32.totalorder %s36, 0
    %p335 = por %p333, %p334
    %p336 = scmp.ne.s32.totalorder %s324, %s325
    %p337 = scmp.eq.s32.totalorder %s37, 1
    %p338 = por %p336, %p337
    %p340 = scmp.ne.s32.totalorder %s325, %s339
    %p341 = scmp.eq.s32.totalorder %s37, 0
    %p342 = por %p340, %p341
    %s344 = sadd.s32 %s343, 1
    %p347 = scmp.eq.s32.totalorder %s31, 1
    %p348 = scmp.ne.s32.totalorder %s343, %s345
    %p349 = scmp.eq.s32.totalorder %s31, 0
    %p350 = por %p348, %p349
    %p351 = scmp.ne.s32.totalorder %s343, %s345
    %p352 = scmp.eq.s32.totalorder %s36, 1
    %p353 = por %p351, %p352
    %p354 = scmp.ne.s32.totalorder %s345, %s346
    %p355 = scmp.eq.s32.totalorder %s36, 0
    %p356 = por %p354, %p355
    %p357 = scmp.ne.s32.totalorder %s345, %s346
    %p358 = scmp.eq.s32.totalorder %s37, 1
    %p359 = por %p357, %p358
    %p361 = scmp.ne.s32.totalorder %s346, %s360
    %p362 = scmp.eq.s32.totalorder %s37, 0
    %p363 = por %p361, %p362
    %s365 = sadd.s32 %s364, 1
    %p368 = scmp.eq.s32.totalorder %s31, 1
    %p369 = scmp.ne.s32.totalorder %s364, %s366
    %p370 = scmp.eq.s32.totalorder %s31, 0
    %p371 = por %p369, %p370
    %p372 = scmp.ne.s32.totalorder %s364, %s366
    %p373 = scmp.eq.s32.totalorder %s36, 1
    %p374 = por %p372, %p373
    %p375 = scmp.ne.s32.totalorder %s366, %s367
    %p376 = scmp.eq.s32.totalorder %s36, 0
    %p377 = por %p375, %p376
    %p378 = scmp.ne.s32.totalorder %s366, %s367
    %p379 = scmp.eq.s32.totalorder %s37, 1
    %p380 = por %p378, %p379
    %p382 = scmp.ne.s32.totalorder %s367, %s381
    %p383 = scmp.eq.s32.totalorder %s37, 0
    %p384 = por %p382, %p383
    %s386 = sadd.s32 %s385, 1
    %p389 = scmp.eq.s32.totalorder %s31, 1
    %p390 = scmp.ne.s32.totalorder %s385, %s387
    %p391 = scmp.eq.s32.totalorder %s31, 0
    %p392 = por %p390, %p391
    %p393 = scmp.ne.s32.totalorder %s385, %s387
    %p394 = scmp.eq.s32.totalorder %s36, 1
    %p395 = por %p393, %p394
    %p396 = scmp.ne.s32.totalorder %s387, %s388
    %p397 = scmp.eq.s32.totalorder %s36, 0
    %p398 = por %p396, %p397
    %p399 = scmp.ne.s32.totalorder %s387, %s388
    %p400 = scmp.eq.s32.totalorder %s37, 1
    %p401 = por %p399, %p400
    %p403 = scmp.ne.s32.totalorder %s388, %s402
    %p404 = scmp.eq.s32.totalorder %s37, 0
    %p405 = por %p403, %p404
    %s407 = sadd.s32 %s406, 1
    %p410 = scmp.eq.s32.totalorder %s31, 1
    %p411 = scmp.ne.s32.totalorder %s406, %s408
    %p412 = scmp.eq.s32.totalorder %s31, 0
    %p413 = por %p411, %p412
    %p414 = scmp.ne.s32.totalorder %s406, %s408
    %p415 = scmp.eq.s32.totalorder %s36, 1
    %p416 = por %p414, %p415
    %p417 = scmp.ne.s32.totalorder %s408, %s409
    %p418 = scmp.eq.s32.totalorder %s36, 0
    %p419 = por %p417, %p418
    %p420 = scmp.ne.s32.totalorder %s408, %s409
    %p421 = scmp.eq.s32.totalorder %s37, 1
    %p422 = por %p420, %p421
    %p424 = scmp.ne.s32.totalorder %s409, %s423
    %p425 = scmp.eq.s32.totalorder %s37, 0
    %p426 = por %p424, %p425
    %s428 = sadd.s32 %s427, 1
    %p431 = scmp.eq.s32.totalorder %s31, 1
    %p432 = scmp.ne.s32.totalorder %s427, %s429
    %p433 = scmp.eq.s32.totalorder %s31, 0
    %p434 = por %p432, %p433
    %p435 = scmp.ne.s32.totalorder %s427, %s429
    %p436 = scmp.eq.s32.totalorder %s36, 1
    %p437 = por %p435, %p436
    %p438 = scmp.ne.s32.totalorder %s429, %s430
    %p439 = scmp.eq.s32.totalorder %s36, 0
    %p440 = por %p438, %p439
    %p441 = scmp.ne.s32.totalorder %s429, %s430
    %p442 = scmp.eq.s32.totalorder %s37, 1
    %p443 = por %p441, %p442
    %p445 = scmp.ne.s32.totalorder %s430, %s444
    %p446 = scmp.eq.s32.totalorder %s37, 0
    %p447 = por %p445, %p446
    %s449 = sadd.s32 %s448, 1
    %p452 = scmp.eq.s32.totalorder %s31, 1
    %p453 = scmp.ne.s32.totalorder %s448, %s450
    %p454 = scmp.eq.s32.totalorder %s31, 0
    %p455 = por %p453, %p454
    %p456 = scmp.ne.s32.totalorder %s448, %s450
    %p457 = scmp.eq.s32.totalorder %s36, 1
    %p458 = por %p456, %p457
    %p459 = scmp.ne.s32.totalorder %s450, %s451
    %p460 = scmp.eq.s32.totalorder %s36, 0
    %p461 = por %p459, %p460
    %p462 = scmp.ne.s32.totalorder %s450, %s451
    %p463 = scmp.eq.s32.totalorder %s37, 1
    %p464 = por %p462, %p463
    %p466 = scmp.ne.s32.totalorder %s451, %s465
    %p467 = scmp.eq.s32.totalorder %s37, 0
    %p468 = por %p466, %p467
    %s470 = sadd.s32 %s469, 1
    %p473 = scmp.eq.s32.totalorder %s31, 1
    %p474 = scmp.ne.s32.totalorder %s469, %s471
    %p475 = scmp.eq.s32.totalorder %s31, 0
    %p476 = por %p474, %p475
    %p477 = scmp.ne.s32.totalorder %s469, %s471
    %p478 = scmp.eq.s32.totalorder %s36, 1
    %p479 = por %p477, %p478
    %p480 = scmp.ne.s32.totalorder %s471, %s472
    %p481 = scmp.eq.s32.totalorder %s36, 0
    %p482 = por %p480, %p481
    %p483 = scmp.ne.s32.totalorder %s471, %s472
    %p484 = scmp.eq.s32.totalorder %s37, 1
    %p485 = por %p483, %p484
    %p487 = scmp.ne.s32.totalorder %s472, %s486
    %p488 = scmp.eq.s32.totalorder %s37, 0
    %p489 = por %p487, %p488
    %s491 = sadd.s32 %s490, 1
    %p494 = scmp.eq.s32.totalorder %s31, 1
    %p495 = scmp.ne.s32.totalorder %s490, %s492
    %p496 = scmp.eq.s32.totalorder %s31, 0
    %p497 = por %p495, %p496
    %p498 = scmp.ne.s32.totalorder %s490, %s492
    %p499 = scmp.eq.s32.totalorder %s36, 1
    %p500 = por %p498, %p499
    %p501 = scmp.ne.s32.totalorder %s492, %s493
    %p502 = scmp.eq.s32.totalorder %s36, 0
    %p503 = por %p501, %p502
    %p504 = scmp.ne.s32.totalorder %s492, %s493
    %p505 = scmp.eq.s32.totalorder %s37, 1
    %p506 = por %p504, %p505
    %p508 = scmp.ne.s32.totalorder %s493, %s507
    %p509 = scmp.eq.s32.totalorder %s37, 0
    %p510 = por %p508, %p509
    %s512 = sadd.s32 %s511, 1
    %p515 = scmp.eq.s32.totalorder %s31, 1
    %p516 = scmp.ne.s32.totalorder %s511, %s513
    %p517 = scmp.eq.s32.totalorder %s31, 0
    %p518 = por %p516, %p517
    %p519 = scmp.ne.s32.totalorder %s511, %s513
    %p520 = scmp.eq.s32.totalorder %s36, 1
    %p521 = por %p519, %p520
    %p522 = scmp.ne.s32.totalorder %s513, %s514
    %p523 = scmp.eq.s32.totalorder %s36, 0
    %p524 = por %p522, %p523
    %p525 = scmp.ne.s32.totalorder %s513, %s514
    %p526 = scmp.eq.s32.totalorder %s37, 1
    %p527 = por %p525, %p526
    %p529 = scmp.ne.s32.totalorder %s514, %s528
    %p530 = scmp.eq.s32.totalorder %s37, 0
    %p531 = por %p529, %p530
    %s533 = sadd.s32 %s532, 1
    %p536 = scmp.eq.s32.totalorder %s31, 1
    %p537 = scmp.ne.s32.totalorder %s532, %s534
    %p538 = scmp.eq.s32.totalorder %s31, 0
    %p539 = por %p537, %p538
    %p540 = scmp.ne.s32.totalorder %s532, %s534
    %p541 = scmp.eq.s32.totalorder %s36, 1
    %p542 = por %p540, %p541
    %p543 = scmp.ne.s32.totalorder %s534, %s535
    %p544 = scmp.eq.s32.totalorder %s36, 0
    %p545 = por %p543, %p544
    %p546 = scmp.ne.s32.totalorder %s534, %s535
    %p547 = scmp.eq.s32.totalorder %s37, 1
    %p548 = por %p546, %p547
    %p550 = scmp.ne.s32.totalorder %s535, %s549
    %p551 = scmp.eq.s32.totalorder %s37, 0
    %p552 = por %p550, %p551
    %s554 = sadd.s32 %s553, 1
    %p557 = scmp.eq.s32.totalorder %s31, 1
    %p558 = scmp.ne.s32.totalorder %s553, %s555
    %p559 = scmp.eq.s32.totalorder %s31, 0
    %p560 = por %p558, %p559
    %p561 = scmp.ne.s32.totalorder %s553, %s555
    %p562 = scmp.eq.s32.totalorder %s36, 1
    %p563 = por %p561, %p562
    %p564 = scmp.ne.s32.totalorder %s555, %s556
    %p565 = scmp.eq.s32.totalorder %s36, 0
    %p566 = por %p564, %p565
    %p567 = scmp.ne.s32.totalorder %s555, %s556
    %p568 = scmp.eq.s32.totalorder %s37, 1
    %p569 = por %p567, %p568
    %p571 = scmp.ne.s32.totalorder %s556, %s570
    %p572 = scmp.eq.s32.totalorder %s37, 0
    %p573 = por %p571, %p572
    %s574 = ssub.s32 %s31, %s38
    %p575 = scmp.eq.s32.totalorder %s574, 0
    %s577 = sadd.s32 %s576, 1
    %s578 = scalar_select %p575, %s576, %s577
    %p581 = pneg %p575
    %p582 = scmp.eq.s32.totalorder %s31, 1
    %p583 = por %p581, %p582
    %p584 = scmp.ne.s32.totalorder %s576, %s579
    %p585 = scmp.eq.s32.totalorder %s31, 0
    %p586 = por %p584, %p585
    %p587 = scmp.ne.s32.totalorder %s576, %s579
    %p588 = scmp.eq.s32.totalorder %s36, 1
    %p589 = por %p587, %p588
    %p590 = scmp.ne.s32.totalorder %s579, %s580
    %p591 = scmp.eq.s32.totalorder %s36, 0
    %p592 = por %p590, %p591
    %p593 = scmp.ne.s32.totalorder %s579, %s580
    %p594 = scmp.eq.s32.totalorder %s37, 1
    %p595 = por %p593, %p594
    %p597 = scmp.ne.s32.totalorder %s580, %s596
    %p598 = scmp.eq.s32.totalorder %s37, 0
    %p599 = por %p597, %p598
    %p600 = scmp.le.s32.totalorder 1, %s31
    %p601 = scmp.lt.s32.totalorder %s31, 3
    %p602 = pnand %p600, %p601
    %p603 = pneg %p602
    // Predicated region
    $region9: #{guided_upsampling_block.1} parent=5 // pred_check
      _
    $region10: #{guided_upsampling_block.1} parent=5 // pred_check_branch
      %605 = sbr.rel (%p602) target = $region12
    $region11: #{guided_upsampling_block.1} parent=5 // pred_region
      %s606 = ssub.s32 %s31, 1
      // Predicated region
      $region13: #{guided_upsampling_block.1} parent=11 // pred_check
        %p607 = pneg %p52
      $region14: #{guided_upsampling_block.1} parent=11 // pred_check_branch
        %609 = sbr.rel (%p607) target = $region16
      $region15: #{guided_upsampling_block.1} parent=11 // pred_region
        _
      $region16: #{guided_upsampling_block.1} parent=11 // pred_fallthru
        _
      // Predicated region
      $region17: #{guided_upsampling_block.1} parent=11 // pred_check
        %p610 = pneg %p125
      $region18: #{guided_upsampling_block.1} parent=11 // pred_check_branch
        %612 = sbr.rel (%p610) target = $region20
      $region19: #{guided_upsampling_block.1} parent=11 // pred_region
        _
      $region20: #{guided_upsampling_block.1} parent=11 // pred_fallthru
        _
      // Predicated region
      $region21: #{guided_upsampling_block.1} parent=11 // pred_check
        %p613 = pneg %p146
      $region22: #{guided_upsampling_block.1} parent=11 // pred_check_branch
        %615 = sbr.rel (%p613) target = $region24
      $region23: #{guided_upsampling_block.1} parent=11 // pred_region
        _
      $region24: #{guided_upsampling_block.1} parent=11 // pred_fallthru
        _
      // Predicated region
      $region25: #{guided_upsampling_block.1} parent=11 // pred_check
        %p616 = pneg %p167
      $region26: #{guided_upsampling_block.1} parent=11 // pred_check_branch
        %618 = sbr.rel (%p616) target = $region28
      $region27: #{guided_upsampling_block.1} parent=11 // pred_region
        _
      $region28: #{guided_upsampling_block.1} parent=11 // pred_fallthru
        _
      // Predicated region
      $region29: #{guided_upsampling_block.1} parent=11 // pred_check
        %p619 = pneg %p188
      $region30: #{guided_upsampling_block.1} parent=11 // pred_check_branch
        %621 = sbr.rel (%p619) target = $region32
      $region31: #{guided_upsampling_block.1} parent=11 // pred_region
        _
      $region32: #{guided_upsampling_block.1} parent=11 // pred_fallthru
        _
      // Predicated region
      $region33: #{guided_upsampling_block.1} parent=11 // pred_check
        %p622 = pneg %p209
      $region34: #{guided_upsampling_block.1} parent=11 // pred_check_branch
        %624 = sbr.rel (%p622) target = $region36
      $region35: #{guided_upsampling_block.1} parent=11 // pred_region
        _
      $region36: #{guided_upsampling_block.1} parent=11 // pred_fallthru
        _
      // Predicated region
      $region37: #{guided_upsampling_block.1} parent=11 // pred_check
        %p625 = pneg %p230
      $region38: #{guided_upsampling_block.1} parent=11 // pred_check_branch
        %627 = sbr.rel (%p625) target = $region40
      $region39: #{guided_upsampling_block.1} parent=11 // pred_region
        _
      $region40: #{guided_upsampling_block.1} parent=11 // pred_fallthru
        _
      // Predicated region
      $region41: #{guided_upsampling_block.1} parent=11 // pred_check
        %p628 = pneg %p251
      $region42: #{guided_upsampling_block.1} parent=11 // pred_check_branch
        %630 = sbr.rel (%p628) target = $region44
      $region43: #{guided_upsampling_block.1} parent=11 // pred_region
        _
      $region44: #{guided_upsampling_block.1} parent=11 // pred_fallthru
        _
      // Predicated region
      $region45: #{guided_upsampling_block.1} parent=11 // pred_check
        %p631 = pneg %p272
      $region46: #{guided_upsampling_block.1} parent=11 // pred_check_branch
        %633 = sbr.rel (%p631) target = $region48
      $region47: #{guided_upsampling_block.1} parent=11 // pred_region
        _
      $region48: #{guided_upsampling_block.1} parent=11 // pred_fallthru
        _
      // Predicated region
      $region49: #{guided_upsampling_block.1} parent=11 // pred_check
        %p634 = pneg %p293
      $region50: #{guided_upsampling_block.1} parent=11 // pred_check_branch
        %636 = sbr.rel (%p634) target = $region52
      $region51: #{guided_upsampling_block.1} parent=11 // pred_region
        _
      $region52: #{guided_upsampling_block.1} parent=11 // pred_fallthru
        _
      // Predicated region
      $region53: #{guided_upsampling_block.1} parent=11 // pred_check
        %p637 = pneg %p314
      $region54: #{guided_upsampling_block.1} parent=11 // pred_check_branch
        %639 = sbr.rel (%p637) target = $region56
      $region55: #{guided_upsampling_block.1} parent=11 // pred_region
        _
      $region56: #{guided_upsampling_block.1} parent=11 // pred_fallthru
        _
      // Predicated region
      $region57: #{guided_upsampling_block.1} parent=11 // pred_check
        %p640 = pneg %p335
      $region58: #{guided_upsampling_block.1} parent=11 // pred_check_branch
        %642 = sbr.rel (%p640) target = $region60
      $region59: #{guided_upsampling_block.1} parent=11 // pred_region
        _
      $region60: #{guided_upsampling_block.1} parent=11 // pred_fallthru
        _
      // Predicated region
      $region61: #{guided_upsampling_block.1} parent=11 // pred_check
        %p643 = pneg %p356
      $region62: #{guided_upsampling_block.1} parent=11 // pred_check_branch
        %645 = sbr.rel (%p643) target = $region64
      $region63: #{guided_upsampling_block.1} parent=11 // pred_region
        _
      $region64: #{guided_upsampling_block.1} parent=11 // pred_fallthru
        _
      // Predicated region
      $region65: #{guided_upsampling_block.1} parent=11 // pred_check
        %p646 = pneg %p377
      $region66: #{guided_upsampling_block.1} parent=11 // pred_check_branch
        %648 = sbr.rel (%p646) target = $region68
      $region67: #{guided_upsampling_block.1} parent=11 // pred_region
        _
      $region68: #{guided_upsampling_block.1} parent=11 // pred_fallthru
        _
      // Predicated region
      $region69: #{guided_upsampling_block.1} parent=11 // pred_check
        %p649 = pneg %p398
      $region70: #{guided_upsampling_block.1} parent=11 // pred_check_branch
        %651 = sbr.rel (%p649) target = $region72
      $region71: #{guided_upsampling_block.1} parent=11 // pred_region
        _
      $region72: #{guided_upsampling_block.1} parent=11 // pred_fallthru
        _
      // Predicated region
      $region73: #{guided_upsampling_block.1} parent=11 // pred_check
        %p652 = pneg %p419
      $region74: #{guided_upsampling_block.1} parent=11 // pred_check_branch
        %654 = sbr.rel (%p652) target = $region76
      $region75: #{guided_upsampling_block.1} parent=11 // pred_region
        _
      $region76: #{guided_upsampling_block.1} parent=11 // pred_fallthru
        _
      // Predicated region
      $region77: #{guided_upsampling_block.1} parent=11 // pred_check
        %p655 = pneg %p440
      $region78: #{guided_upsampling_block.1} parent=11 // pred_check_branch
        %657 = sbr.rel (%p655) target = $region80
      $region79: #{guided_upsampling_block.1} parent=11 // pred_region
        _
      $region80: #{guided_upsampling_block.1} parent=11 // pred_fallthru
        _
      // Predicated region
      $region81: #{guided_upsampling_block.1} parent=11 // pred_check
        %p658 = pneg %p461
      $region82: #{guided_upsampling_block.1} parent=11 // pred_check_branch
        %660 = sbr.rel (%p658) target = $region84
      $region83: #{guided_upsampling_block.1} parent=11 // pred_region
        _
      $region84: #{guided_upsampling_block.1} parent=11 // pred_fallthru
        _
      // Predicated region
      $region85: #{guided_upsampling_block.1} parent=11 // pred_check
        %p661 = pneg %p482
      $region86: #{guided_upsampling_block.1} parent=11 // pred_check_branch
        %663 = sbr.rel (%p661) target = $region88
      $region87: #{guided_upsampling_block.1} parent=11 // pred_region
        _
      $region88: #{guided_upsampling_block.1} parent=11 // pred_fallthru
        _
      // Predicated region
      $region89: #{guided_upsampling_block.1} parent=11 // pred_check
        %p664 = pneg %p503
      $region90: #{guided_upsampling_block.1} parent=11 // pred_check_branch
        %666 = sbr.rel (%p664) target = $region92
      $region91: #{guided_upsampling_block.1} parent=11 // pred_region
        _
      $region92: #{guided_upsampling_block.1} parent=11 // pred_fallthru
        _
      // Predicated region
      $region93: #{guided_upsampling_block.1} parent=11 // pred_check
        %p667 = pneg %p524
      $region94: #{guided_upsampling_block.1} parent=11 // pred_check_branch
        %669 = sbr.rel (%p667) target = $region96
      $region95: #{guided_upsampling_block.1} parent=11 // pred_region
        _
      $region96: #{guided_upsampling_block.1} parent=11 // pred_fallthru
        _
      // Predicated region
      $region97: #{guided_upsampling_block.1} parent=11 // pred_check
        %p670 = pneg %p545
      $region98: #{guided_upsampling_block.1} parent=11 // pred_check_branch
        %672 = sbr.rel (%p670) target = $region100
      $region99: #{guided_upsampling_block.1} parent=11 // pred_region
        _
      $region100: #{guided_upsampling_block.1} parent=11 // pred_fallthru
        _
      // Predicated region
      $region101: #{guided_upsampling_block.1} parent=11 // pred_check
        %p673 = pneg %p566
      $region102: #{guided_upsampling_block.1} parent=11 // pred_check_branch
        %675 = sbr.rel (%p673) target = $region104
      $region103: #{guided_upsampling_block.1} parent=11 // pred_region
        _
      $region104: #{guided_upsampling_block.1} parent=11 // pred_fallthru
        _
    $region12: #{guided_upsampling_block.1} parent=5 // pred_fallthru
      _
    %p676 = scmp.lt.s32.totalorder %s31, 2
    // Predicated region
    $region105: #{guided_upsampling_block.1} parent=5 // pred_check
      %p677 = pneg %p676
    $region106: #{guided_upsampling_block.1} parent=5 // pred_check_branch
      %679 = sbr.rel (%p677) target = $region108
    $region107: #{guided_upsampling_block.1} parent=5 // pred_region
      // Predicated region
      $region109: #{guided_upsampling_block.1} parent=107 // pred_check
        %p680 = pneg %p72
      $region110: #{guided_upsampling_block.1} parent=107 // pred_check_branch
        %682 = sbr.rel (%p680) target = $region112
      $region111: #{guided_upsampling_block.1} parent=107 // pred_region
        %p683 = scmp.lt.s32.totalorder %s31, 1
        %s684 = scalar_select %p683, %s31, 1
        %s685 = smul.addr %s684, 2
        %s686 = smul.addr %s685, 8
        %s687 = scalar_lea.vmem %s1, %s686
      $region112: #{guided_upsampling_block.1} parent=107 // pred_fallthru
        _
      // Predicated region
      $region113: #{guided_upsampling_block.1} parent=107 // pred_check
        %p688 = pneg %p98
      $region114: #{guided_upsampling_block.1} parent=107 // pred_check_branch
        %690 = sbr.rel (%p688) target = $region116
      $region115: #{guided_upsampling_block.1} parent=107 // pred_region
        %p691 = scmp.lt.s32.totalorder %s31, 1
        %s692 = scalar_select %p691, %s31, 1
        %s693 = smul.addr %s692, 2
        %s694 = smul.addr %s693, 8
        %s695 = scalar_lea.vmem %s2, %s694
      $region116: #{guided_upsampling_block.1} parent=107 // pred_fallthru
        _
    $region108: #{guided_upsampling_block.1} parent=5 // pred_fallthru
      _
    %p696 = scmp.le.s32.totalorder 1, %s31
    %p697 = scmp.lt.s32.totalorder %s31, 3
    %p698 = pnand %p696, %p697
    %p699 = pneg %p698
    // Predicated region
    $region117: #{guided_upsampling_block.1} parent=5 // pred_check
      _
    $region118: #{guided_upsampling_block.1} parent=5 // pred_check_branch
      %701 = sbr.rel (%p698) target = $region120
    $region119: #{guided_upsampling_block.1} parent=5 // pred_region
      %s702 = ssub.s32 %s31, 1
      %p703 = pneg %p52
      %p704 = pneg %p49
      %p705 = scmp.lt.s32.totalorder %s36, 1
      %s706 = scalar_select %p705, %s36, 1
      %s707 = smul.addr %s706, 2
      %s708 = smul.addr %s707, 8
      %s709 = scalar_lea.vmem %s1, %s708
      %p710 = pneg %p78
      %p711 = pneg %p75
      %p712 = scmp.lt.s32.totalorder %s36, 1
      %s713 = scalar_select %p712, %s36, 1
      %s714 = smul.addr %s713, 2
      %s715 = smul.addr %s714, 8
      %s716 = scalar_lea.vmem %s2, %s715
      %p717 = pneg %p104
      %p718 = pneg %p101
      %p719 = pneg %p125
      %p720 = pneg %p122
      %p721 = pneg %p146
      %p722 = pneg %p143
      %p723 = pneg %p167
      %p724 = pneg %p164
      %p725 = pneg %p188
      %p726 = pneg %p185
      %p727 = pneg %p209
      %p728 = pneg %p206
      %p729 = pneg %p230
      %p730 = pneg %p227
      %p731 = pneg %p251
      %p732 = pneg %p248
      %p733 = pneg %p272
      %p734 = pneg %p269
      %p735 = pneg %p293
      %p736 = pneg %p290
      %p737 = pneg %p314
      %p738 = pneg %p311
      %p739 = pneg %p335
      %p740 = pneg %p332
      %p741 = pneg %p356
      %p742 = pneg %p353
      %p743 = pneg %p377
      %p744 = pneg %p374
      %p745 = pneg %p398
      %p746 = pneg %p395
      %p747 = pneg %p419
      %p748 = pneg %p416
      %p749 = pneg %p440
      %p750 = pneg %p437
      %p751 = pneg %p461
      %p752 = pneg %p458
      %p753 = pneg %p482
      %p754 = pneg %p479
      %p755 = pneg %p503
      %p756 = pneg %p500
      %p757 = pneg %p524
      %p758 = pneg %p521
      %p759 = pneg %p545
      %p760 = pneg %p542
      %p761 = pneg %p566
      %p762 = pneg %p563
      %p763 = pneg %p592
      %p764 = pneg %p589
      %p765 = scmp.lt.s32.totalorder %s36, 1
      %s766 = scalar_select %p765, %s36, 1
      %s767 = smul.addr %s766, 2
      %s768 = smul.addr %s767, 4
      %s769 = scalar_lea.vmem %s25, %s768
      %p770 = scmp.lt.s32.totalorder %s36, 1
      %s771 = scalar_select %p770, %s36, 1
      %s772 = smul.addr %s771, 2
      %s773 = smul.addr %s772, 8
      %s774 = scalar_lea.vmem %s1, %s773
      %p775 = scmp.lt.s32.totalorder %s36, 1
      %s776 = scalar_select %p775, %s36, 1
      %s777 = smul.addr %s776, 2
      %s778 = smul.addr %s777, 8
      %s779 = scalar_lea.vmem %s2, %s778
      %p780 = scmp.lt.s32.totalorder %s36, 1
      %s781 = scalar_select %p780, %s36, 1
      %s782 = smul.addr %s781, 2
      %s783 = smul.addr %s782, 4
      %s784 = scalar_lea.vmem %s25, %s783
      %v786 = vld [vmem:[%s0] sm:$0xff]
      %v787 = vld [vmem:[%s0 + $0x8] sm:$0xff]
      %v788 = vld [vmem:[%s0 + $0x10] sm:$0x1]
      %v789 = vld [vmem:[%s0 + $0x18] sm:$0x1]
      %v790 = vld [vmem:[%s774] sm:$0xff]
      %v791 = vld [vmem:[%s774 + $0x8] sm:$0xff]
      %v792 = vld [vmem:[%s779] sm:$0xff]
      %v793 = vld [vmem:[%s779 + $0x8] sm:$0xff]
      %v794 = vld [vmem:[%s3] sm:$0xff]
      %795 = vrot.lane.b32.xlu0 %v790, 17
      %v796 = vpop.permute.xlu0 %795
      %797 = vrot.lane.b32.xlu0 %v791, 17
      %v798 = vpop.permute.xlu0 %797
      %v799 = vlaneseq
      %v800 = vand.u32 %v799, 127
      %vm801 = vcmp.lt.s32.totalorder %v800, 17
      %v802 = vsel %vm801, %v796, %v798
      %v803 = vsel %vm801, %v798, %v796
      %v804 = vlaneseq
      %v805 = vshrl.u32 %v804, 7
      %v806 = vsub.s32 0, %v805
      %v807 = vrot.slane %v786, %v806
      %v808 = vlaneseq
      %v809 = vshrl.u32 %v808, 7
      %v810 = vsub.s32 0, %v809
      %v811 = vrot.slane %v787, %v810
      %v812 = vmul.f32 %v803, %v807
      %v813 = vmul.f32 %v802, %v811
      %814 = vrot.lane.b32.xlu0 %v790, 16
      %v815 = vpop.permute.xlu0 %814
      %816 = vrot.lane.b32.xlu0 %v791, 16
      %v817 = vpop.permute.xlu0 %816
      %vm818 = vcmp.lt.s32.totalorder %v800, 16
      %v819 = vsel %vm818, %v815, %v817
      %v820 = vsel %vm818, %v817, %v815
      %v821 = vlaneseq
      %v822 = vshrl.u32 %v821, 7
      %v823 = vsub.s32 1, %v822
      %v824 = vrot.slane %v786, %v823
      %v825 = vlaneseq
      %v826 = vshrl.u32 %v825, 7
      %v827 = vsub.s32 1, %v826
      %v828 = vrot.slane %v787, %v827
      %v829 = vmul.f32 %v820, %v824
      %v830 = vmul.f32 %v819, %v828
      %831 = vrot.lane.b32.xlu0 %v790, 15
      %v832 = vpop.permute.xlu0 %831
      %833 = vrot.lane.b32.xlu0 %v791, 15
      %v834 = vpop.permute.xlu0 %833
      %vm835 = vcmp.lt.s32.totalorder %v800, 15
      %v836 = vsel %vm835, %v832, %v834
      %v837 = vsel %vm835, %v834, %v832
      %v838 = vlaneseq
      %v839 = vshrl.u32 %v838, 7
      %v840 = vsub.s32 2, %v839
      %v841 = vrot.slane %v786, %v840
      %v842 = vlaneseq
      %v843 = vshrl.u32 %v842, 7
      %v844 = vsub.s32 2, %v843
      %v845 = vrot.slane %v787, %v844
      %v846 = vmul.f32 %v837, %v841
      %v847 = vmul.f32 %v836, %v845
      %848 = vrot.lane.b32.xlu0 %v790, 1
      %v849 = vpop.permute.xlu0 %848
      %850 = vrot.lane.b32.xlu0 %v791, 1
      %v851 = vpop.permute.xlu0 %850
      %vm852 = vcmp.lt.s32.totalorder %v800, 1
      %v853 = vsel %vm852, %v849, %v851
      %v854 = vsel %vm852, %v851, %v849
      %v855 = vlaneseq
      %v856 = vshrl.u32 %v855, 7
      %v857 = vsub.s32 3, %v856
      %v858 = vrot.slane %v786, %v857
      %v859 = vlaneseq
      %v860 = vshrl.u32 %v859, 7
      %v861 = vsub.s32 3, %v860
      %v862 = vrot.slane %v787, %v861
      %v863 = vmul.f32 %v854, %v858
      %v864 = vmul.f32 %v853, %v862
      %865 = vrot.lane.b32.xlu0 %v790, 127
      %v866 = vpop.permute.xlu0 %865
      %867 = vrot.lane.b32.xlu0 %v791, 127
      %v868 = vpop.permute.xlu0 %867
      %vm869 = vcmp.lt.s32.totalorder %v800, 127
      %v870 = vsel %vm869, %v866, %v868
      %v871 = vsel %vm869, %v868, %v866
      %v872 = vlaneseq
      %v873 = vshrl.u32 %v872, 7
      %v874 = vsub.s32 5, %v873
      %v875 = vrot.slane %v786, %v874
      %v876 = vlaneseq
      %v877 = vshrl.u32 %v876, 7
      %v878 = vsub.s32 5, %v877
      %v879 = vrot.slane %v787, %v878
      %v880 = vmul.f32 %v870, %v875
      %v881 = vmul.f32 %v871, %v879
      %882 = vrot.lane.b32.xlu0 %v790, 113
      %v883 = vpop.permute.xlu0 %882
      %884 = vrot.lane.b32.xlu0 %v791, 113
      %v885 = vpop.permute.xlu0 %884
      %vm886 = vcmp.lt.s32.totalorder %v800, 113
      %v887 = vsel %vm886, %v883, %v885
      %v888 = vsel %vm886, %v885, %v883
      %v889 = vlaneseq
      %v890 = vshrl.u32 %v889, 7
      %v891 = vsub.s32 6, %v890
      %v892 = vrot.slane %v786, %v891
      %v893 = vlaneseq
      %v894 = vshrl.u32 %v893, 7
      %v895 = vsub.s32 6, %v894
      %v896 = vrot.slane %v787, %v895
      %v897 = vmul.f32 %v887, %v892
      %v898 = vmul.f32 %v888, %v896
      %899 = vrot.lane.b32.xlu0 %v790, 112
      %v900 = vpop.permute.xlu0 %899
      %901 = vrot.lane.b32.xlu0 %v791, 112
      %v902 = vpop.permute.xlu0 %901
      %vm903 = vcmp.lt.s32.totalorder %v800, 112
      %v904 = vsel %vm903, %v900, %v902
      %v905 = vsel %vm903, %v902, %v900
      %v906 = vlaneseq
      %v907 = vshrl.u32 %v906, 7
      %v908 = vsub.s32 7, %v907
      %v909 = vrot.slane %v786, %v908
      %v910 = vlaneseq
      %v911 = vshrl.u32 %v910, 7
      %v912 = vsub.s32 7, %v911
      %v913 = vrot.slane %v787, %v912
      %v914 = vmul.f32 %v904, %v909
      %v915 = vmul.f32 %v905, %v913
      %916 = vrot.lane.b32.xlu0 %v790, 111
      %v917 = vpop.permute.xlu0 %916
      %918 = vrot.lane.b32.xlu0 %v791, 111
      %v919 = vpop.permute.xlu0 %918
      %vm920 = vcmp.lt.s32.totalorder %v800, 111
      %v921 = vsel %vm920, %v917, %v919
      %v922 = vsel %vm920, %v919, %v917
      %v923 = vlaneseq
      %v924 = vshrl.u32 %v923, 7
      %v925 = vsub.s32 0, %v924
      %v926 = vrot.slane %v788, %v925
      %v927 = vlaneseq
      %v928 = vshrl.u32 %v927, 7
      %v929 = vsub.s32 0, %v928
      %v930 = vrot.slane %v789, %v929
      %v931 = vmul.f32 %v921, %v926
      %v932 = vmul.f32 %v922, %v930
      %v933 = vpack.c.bf16 %v794, %v794
      %v934 = vpack.c.bf16 %v829, %v812
      %v935 = vpack.c.bf16 %v830, %v813
      %v936 = vpack.c.bf16 %v863, %v846
      %v937 = vpack.c.bf16 %v864, %v847
      %v938 = vpack.c.bf16 %v880, %v790
      %v939 = vpack.c.bf16 %v881, %v791
      %v940 = vpack.c.bf16 %v914, %v897
      %v941 = vpack.c.bf16 %v915, %v898
      %v942 = vpack.c.bf16 %v931, %v931
      %v943 = vpack.c.bf16 %v932, %v932
      %vm944 = vcmask 588800
      %v946 = vsel %vm944, %v933, 0
      %vm948 = vcmask 1043456
      %v950 = vsel %vm948, %v942, 0
      %v953 = vsel %vm948, %v943, 0
      %955 = vmatprep.subr.bf16.mxu0 0
      %956 = vmatpush1.bf16.msra.mxu0 0
      %957 = vmatprep.subr.bf16.mxu0 0
      %958 = vmatpush1.bf16.msra.mxu0 0
      %959 = vmatprep.subr.bf16.mxu0 0
      %960 = vmatpush1.bf16.msra.mxu0 0
      %961 = vmatprep.subr.bf16.mxu0 %v953
      %962 = vmatpush1.bf16.msra.mxu0 %v950
      %963 = vmatprep.subr.bf16.mxu0 %v941
      %964 = vmatpush1.bf16.msra.mxu0 %v940
      %965 = vmatprep.subr.bf16.mxu0 %v939
      %966 = vmatpush1.bf16.msra.mxu0 %v938
      %967 = vmatprep.subr.bf16.mxu0 %v937
      %968 = vmatpush1.bf16.msra.mxu0 %v936
      %969 = vmatprep.subr.bf16.mxu0 %v935
      %970 = vmatpush1.bf16.msra.mxu0 %v934
      %971 = vmatprep.subr.bf16.mxu0 0
      %972 = vmatpush2.bf16.msra.mxu0 0
      %973 = vmatprep.subr.bf16.mxu0 0
      %974 = vmatpush2.bf16.msra.mxu0 0
      %975 = vmatprep.subr.bf16.mxu0 0
      %976 = vmatpush2.bf16.msra.mxu0 0
      %977 = vmatprep.subr.bf16.mxu0 0
      %978 = vmatpush2.bf16.msra.mxu0 0
      %979 = vmatprep.subr.bf16.mxu0 0
      %980 = vmatpush2.bf16.msra.mxu0 0
      %981 = vmatprep.subr.bf16.mxu0 0
      %982 = vmatpush2.bf16.msra.mxu0 0
      %983 = vmatprep.subr.bf16.mxu0 0
      %984 = vmatpush2.bf16.msra.mxu0 0
      %985 = vmatprep.subr.bf16.mxu0 0
      %986 = vmatpush2.bf16.msra.mxu0 0
      %987 = vmatprep.mubr.bf16.mxu0 0
      %988 = vmatmul.mubr.bf16.gmra.mxu0 %v946
      %v989 = vpop.f32.mrf.mxu0
      %v990 = vadd.f32 0.0, %v989
      %v991 = vpop.f32.mrf.mxu0
      %v992 = vadd.f32 0.0, %v991
      %v993 = vpop.f32.mrf.mxu0
      %v994 = vpop.f32.mrf.mxu0
      %995 = vdwg.mxu0
      %v996 = vld [vmem:[%s4] sm:$0xff]
      %998 = vset.pattern.permute.xlu0 0
      %999 = vperm.xlu0 %998, %v996
      %v1000 = vpop.permute.xlu0 %999
      %v1002 = vmul.f32 %v990, %v1000
      %v1003 = vmul.f32 %v992, %v1000
      %v1004 = vld [vmem:[%s5] sm:$0xff]
      %1006 = vset.pattern.permute.xlu0 0
      %1007 = vperm.xlu0 %1006, %v1004
      %v1008 = vpop.permute.xlu0 %1007
      %v1010 = vadd.f32 %v1002, %v1008
      %v1011 = vadd.f32 %v1003, %v1008
      %v1012 = vmax.f32 %v1010, 0.0
      %v1013 = vmax.f32 %v1011, 0.0
      %v1014 = vld [vmem:[%s6] sm:$0xff]
      %v1015 = vpack.c.bf16 %v1014, %v1014
      %v1016 = vpack.c.bf16 %v1012, %v1012
      %v1017 = vpack.c.bf16 %v1013, %v1013
      %vm1018 = vcmask 64512
      %v1020 = vsel %vm1018, %v1015, 0
      %v1023 = vsel %vm948, %v1016, 0
      %v1026 = vsel %vm948, %v1017, 0
      %1028 = vmatprep.subr.bf16.mxu0 0
      %1029 = vmatpush1.bf16.msra.mxu0 0
      %1030 = vmatprep.subr.bf16.mxu0 0
      %1031 = vmatpush1.bf16.msra.mxu0 0
      %1032 = vmatprep.subr.bf16.mxu0 0
      %1033 = vmatpush1.bf16.msra.mxu0 0
      %1034 = vmatprep.subr.bf16.mxu0 0
      %1035 = vmatpush1.bf16.msra.mxu0 0
      %1036 = vmatprep.subr.bf16.mxu0 0
      %1037 = vmatpush1.bf16.msra.mxu0 0
      %1038 = vmatprep.subr.bf16.mxu0 0
      %1039 = vmatpush1.bf16.msra.mxu0 0
      %1040 = vmatprep.subr.bf16.mxu0 0
      %1041 = vmatpush1.bf16.msra.mxu0 0
      %1042 = vmatprep.subr.bf16.mxu0 %v1026
      %1043 = vmatpush1.bf16.msra.mxu0 %v1023
      %1044 = vmatprep.subr.bf16.mxu0 0
      %1045 = vmatpush2.bf16.msra.mxu0 0
      %1046 = vmatprep.subr.bf16.mxu0 0
      %1047 = vmatpush2.bf16.msra.mxu0 0
      %1048 = vmatprep.subr.bf16.mxu0 0
      %1049 = vmatpush2.bf16.msra.mxu0 0
      %1050 = vmatprep.subr.bf16.mxu0 0
      %1051 = vmatpush2.bf16.msra.mxu0 0
      %1052 = vmatprep.subr.bf16.mxu0 0
      %1053 = vmatpush2.bf16.msra.mxu0 0
      %1054 = vmatprep.subr.bf16.mxu0 0
      %1055 = vmatpush2.bf16.msra.mxu0 0
      %1056 = vmatprep.subr.bf16.mxu0 0
      %1057 = vmatpush2.bf16.msra.mxu0 0
      %1058 = vmatprep.subr.bf16.mxu0 0
      %1059 = vmatpush2.bf16.msra.mxu0 0
      %1060 = vmatprep.mubr.bf16.mxu0 0
      %1061 = vmatmul.mubr.bf16.gmra.mxu0 %v1020
      %v1062 = vpop.f32.mrf.mxu0
      %v1063 = vadd.f32 0.0, %v1062
      %v1064 = vpop.f32.mrf.mxu0
      %v1065 = vadd.f32 0.0, %v1064
      %v1066 = vpop.f32.mrf.mxu0
      %v1067 = vpop.f32.mrf.mxu0
      %1068 = vdwg.mxu0
      %v1069 = vld [vmem:[%s7] sm:$0xff]
      %1071 = vset.pattern.permute.xlu0 0
      %1072 = vperm.xlu0 %1071, %v1069
      %v1073 = vpop.permute.xlu0 %1072
      %v1075 = vmul.f32 %v1063, %v1073
      %v1076 = vmul.f32 %v1065, %v1073
      %v1077 = vld [vmem:[%s8] sm:$0xff]
      %1079 = vset.pattern.permute.xlu0 0
      %1080 = vperm.xlu0 %1079, %v1077
      %v1081 = vpop.permute.xlu0 %1080
      %v1083 = vadd.f32 %v1075, %v1081
      %v1084 = vadd.f32 %v1076, %v1081
      %v1085 = vmax.f32 %v1083, 0.0
      %v1086 = vmax.f32 %v1084, 0.0
      %v1087 = vld [vmem:[%s9] sm:$0xff]
      %1088 = vrot.lane.b32.xlu0 %v792, 17
      %v1089 = vpop.permute.xlu0 %1088
      %1090 = vrot.lane.b32.xlu0 %v793, 17
      %v1091 = vpop.permute.xlu0 %1090
      %v1092 = vsel %vm801, %v1089, %v1091
      %v1093 = vsel %vm801, %v1091, %v1089
      %v1094 = vmul.f32 %v1093, %v807
      %v1095 = vmul.f32 %v1092, %v811
      %1096 = vrot.lane.b32.xlu0 %v792, 16
      %v1097 = vpop.permute.xlu0 %1096
      %1098 = vrot.lane.b32.xlu0 %v793, 16
      %v1099 = vpop.permute.xlu0 %1098
      %v1100 = vsel %vm818, %v1097, %v1099
      %v1101 = vsel %vm818, %v1099, %v1097
      %v1102 = vmul.f32 %v1101, %v824
      %v1103 = vmul.f32 %v1100, %v828
      %1104 = vrot.lane.b32.xlu0 %v792, 15
      %v1105 = vpop.permute.xlu0 %1104
      %1106 = vrot.lane.b32.xlu0 %v793, 15
      %v1107 = vpop.permute.xlu0 %1106
      %v1108 = vsel %vm835, %v1105, %v1107
      %v1109 = vsel %vm835, %v1107, %v1105
      %v1110 = vmul.f32 %v1109, %v841
      %v1111 = vmul.f32 %v1108, %v845
      %1112 = vrot.lane.b32.xlu0 %v792, 1
      %v1113 = vpop.permute.xlu0 %1112
      %1114 = vrot.lane.b32.xlu0 %v793, 1
      %v1115 = vpop.permute.xlu0 %1114
      %v1116 = vsel %vm852, %v1113, %v1115
      %v1117 = vsel %vm852, %v1115, %v1113
      %v1118 = vmul.f32 %v1117, %v858
      %v1119 = vmul.f32 %v1116, %v862
      %1120 = vrot.lane.b32.xlu0 %v792, 127
      %v1121 = vpop.permute.xlu0 %1120
      %1122 = vrot.lane.b32.xlu0 %v793, 127
      %v1123 = vpop.permute.xlu0 %1122
      %v1124 = vsel %vm869, %v1121, %v1123
      %v1125 = vsel %vm869, %v1123, %v1121
      %v1126 = vmul.f32 %v1124, %v875
      %v1127 = vmul.f32 %v1125, %v879
      %1128 = vrot.lane.b32.xlu0 %v792, 113
      %v1129 = vpop.permute.xlu0 %1128
      %1130 = vrot.lane.b32.xlu0 %v793, 113
      %v1131 = vpop.permute.xlu0 %1130
      %v1132 = vsel %vm886, %v1129, %v1131
      %v1133 = vsel %vm886, %v1131, %v1129
      %v1134 = vmul.f32 %v1132, %v892
      %v1135 = vmul.f32 %v1133, %v896
      %1136 = vrot.lane.b32.xlu0 %v792, 112
      %v1137 = vpop.permute.xlu0 %1136
      %1138 = vrot.lane.b32.xlu0 %v793, 112
      %v1139 = vpop.permute.xlu0 %1138
      %v1140 = vsel %vm903, %v1137, %v1139
      %v1141 = vsel %vm903, %v1139, %v1137
      %v1142 = vmul.f32 %v1140, %v909
      %v1143 = vmul.f32 %v1141, %v913
      %1144 = vrot.lane.b32.xlu0 %v792, 111
      %v1145 = vpop.permute.xlu0 %1144
      %1146 = vrot.lane.b32.xlu0 %v793, 111
      %v1147 = vpop.permute.xlu0 %1146
      %v1148 = vsel %vm920, %v1145, %v1147
      %v1149 = vsel %vm920, %v1147, %v1145
      %v1150 = vmul.f32 %v1148, %v926
      %v1151 = vmul.f32 %v1149, %v930
      %v1152 = vpack.c.bf16 %v1087, %v1087
      %v1153 = vpack.c.bf16 %v1102, %v1094
      %v1154 = vpack.c.bf16 %v1103, %v1095
      %v1155 = vpack.c.bf16 %v1118, %v1110
      %v1156 = vpack.c.bf16 %v1119, %v1111
      %v1157 = vpack.c.bf16 %v1126, %v792
      %v1158 = vpack.c.bf16 %v1127, %v793
      %v1159 = vpack.c.bf16 %v1142, %v1134
      %v1160 = vpack.c.bf16 %v1143, %v1135
      %v1161 = vpack.c.bf16 %v1150, %v1150
      %v1162 = vpack.c.bf16 %v1151, %v1151
      %v1164 = vsel %vm944, %v1152, 0
      %v1167 = vsel %vm948, %v1161, 0
      %v1170 = vsel %vm948, %v1162, 0
      %1172 = vmatprep.subr.bf16.mxu0 0
      %1173 = vmatpush1.bf16.msra.mxu0 0
      %1174 = vmatprep.subr.bf16.mxu0 0
      %1175 = vmatpush1.bf16.msra.mxu0 0
      %1176 = vmatprep.subr.bf16.mxu0 0
      %1177 = vmatpush1.bf16.msra.mxu0 0
      %1178 = vmatprep.subr.bf16.mxu0 %v1170
      %1179 = vmatpush1.bf16.msra.mxu0 %v1167
      %1180 = vmatprep.subr.bf16.mxu0 %v1160
      %1181 = vmatpush1.bf16.msra.mxu0 %v1159
      %1182 = vmatprep.subr.bf16.mxu0 %v1158
      %1183 = vmatpush1.bf16.msra.mxu0 %v1157
      %1184 = vmatprep.subr.bf16.mxu0 %v1156
      %1185 = vmatpush1.bf16.msra.mxu0 %v1155
      %1186 = vmatprep.subr.bf16.mxu0 %v1154
      %1187 = vmatpush1.bf16.msra.mxu0 %v1153
      %1188 = vmatprep.subr.bf16.mxu0 0
      %1189 = vmatpush2.bf16.msra.mxu0 0
      %1190 = vmatprep.subr.bf16.mxu0 0
      %1191 = vmatpush2.bf16.msra.mxu0 0
      %1192 = vmatprep.subr.bf16.mxu0 0
      %1193 = vmatpush2.bf16.msra.mxu0 0
      %1194 = vmatprep.subr.bf16.mxu0 0
      %1195 = vmatpush2.bf16.msra.mxu0 0
      %1196 = vmatprep.subr.bf16.mxu0 0
      %1197 = vmatpush2.bf16.msra.mxu0 0
      %1198 = vmatprep.subr.bf16.mxu0 0
      %1199 = vmatpush2.bf16.msra.mxu0 0
      %1200 = vmatprep.subr.bf16.mxu0 0
      %1201 = vmatpush2.bf16.msra.mxu0 0
      %1202 = vmatprep.subr.bf16.mxu0 0
      %1203 = vmatpush2.bf16.msra.mxu0 0
      %1204 = vmatprep.mubr.bf16.mxu0 0
      %1205 = vmatmul.mubr.bf16.gmra.mxu0 %v1164
      %v1206 = vpop.f32.mrf.mxu0
      %v1207 = vadd.f32 0.0, %v1206
      %v1208 = vpop.f32.mrf.mxu0
      %v1209 = vadd.f32 0.0, %v1208
      %v1210 = vpop.f32.mrf.mxu0
      %v1211 = vpop.f32.mrf.mxu0
      %1212 = vdwg.mxu0
      %v1213 = vld [vmem:[%s10] sm:$0xff]
      %1215 = vset.pattern.permute.xlu0 0
      %1216 = vperm.xlu0 %1215, %v1213
      %v1217 = vpop.permute.xlu0 %1216
      %v1219 = vmul.f32 %v1207, %v1217
      %v1220 = vmul.f32 %v1209, %v1217
      %v1221 = vld [vmem:[%s11] sm:$0xff]
      %1223 = vset.pattern.permute.xlu0 0
      %1224 = vperm.xlu0 %1223, %v1221
      %v1225 = vpop.permute.xlu0 %1224
      %v1227 = vadd.f32 %v1219, %v1225
      %v1228 = vadd.f32 %v1220, %v1225
      %v1229 = vmax.f32 %v1227, 0.0
      %v1230 = vmax.f32 %v1228, 0.0
      %v1231 = vld [vmem:[%s12] sm:$0xff]
      %v1232 = vpack.c.bf16 %v1231, %v1231
      %v1233 = vpack.c.bf16 %v1229, %v1229
      %v1234 = vpack.c.bf16 %v1230, %v1230
      %v1236 = vsel %vm1018, %v1232, 0
      %v1239 = vsel %vm948, %v1233, 0
      %v1242 = vsel %vm948, %v1234, 0
      %1244 = vmatprep.subr.bf16.mxu0 0
      %1245 = vmatpush1.bf16.msra.mxu0 0
      %1246 = vmatprep.subr.bf16.mxu0 0
      %1247 = vmatpush1.bf16.msra.mxu0 0
      %1248 = vmatprep.subr.bf16.mxu0 0
      %1249 = vmatpush1.bf16.msra.mxu0 0
      %1250 = vmatprep.subr.bf16.mxu0 0
      %1251 = vmatpush1.bf16.msra.mxu0 0
      %1252 = vmatprep.subr.bf16.mxu0 0
      %1253 = vmatpush1.bf16.msra.mxu0 0
      %1254 = vmatprep.subr.bf16.mxu0 0
      %1255 = vmatpush1.bf16.msra.mxu0 0
      %1256 = vmatprep.subr.bf16.mxu0 0
      %1257 = vmatpush1.bf16.msra.mxu0 0
      %1258 = vmatprep.subr.bf16.mxu0 %v1242
      %1259 = vmatpush1.bf16.msra.mxu0 %v1239
      %1260 = vmatprep.subr.bf16.mxu0 0
      %1261 = vmatpush2.bf16.msra.mxu0 0
      %1262 = vmatprep.subr.bf16.mxu0 0
      %1263 = vmatpush2.bf16.msra.mxu0 0
      %1264 = vmatprep.subr.bf16.mxu0 0
      %1265 = vmatpush2.bf16.msra.mxu0 0
      %1266 = vmatprep.subr.bf16.mxu0 0
      %1267 = vmatpush2.bf16.msra.mxu0 0
      %1268 = vmatprep.subr.bf16.mxu0 0
      %1269 = vmatpush2.bf16.msra.mxu0 0
      %1270 = vmatprep.subr.bf16.mxu0 0
      %1271 = vmatpush2.bf16.msra.mxu0 0
      %1272 = vmatprep.subr.bf16.mxu0 0
      %1273 = vmatpush2.bf16.msra.mxu0 0
      %1274 = vmatprep.subr.bf16.mxu0 0
      %1275 = vmatpush2.bf16.msra.mxu0 0
      %1276 = vmatprep.mubr.bf16.mxu0 0
      %1277 = vmatmul.mubr.bf16.gmra.mxu0 %v1236
      %v1278 = vpop.f32.mrf.mxu0
      %v1279 = vadd.f32 0.0, %v1278
      %v1280 = vpop.f32.mrf.mxu0
      %v1281 = vadd.f32 0.0, %v1280
      %v1282 = vpop.f32.mrf.mxu0
      %v1283 = vpop.f32.mrf.mxu0
      %1284 = vdwg.mxu0
      %v1285 = vld [vmem:[%s13] sm:$0xff]
      %1287 = vset.pattern.permute.xlu0 0
      %1288 = vperm.xlu0 %1287, %v1285
      %v1289 = vpop.permute.xlu0 %1288
      %v1291 = vmul.f32 %v1279, %v1289
      %v1292 = vmul.f32 %v1281, %v1289
      %v1293 = vld [vmem:[%s14] sm:$0xff]
      %1295 = vset.pattern.permute.xlu0 0
      %1296 = vperm.xlu0 %1295, %v1293
      %v1297 = vpop.permute.xlu0 %1296
      %v1299 = vadd.f32 %v1291, %v1297
      %v1300 = vadd.f32 %v1292, %v1297
      %v1301 = vmax.f32 %v1299, 0.0
      %v1302 = vmax.f32 %v1300, 0.0
      %v1303 = vadd.f32 %v1085, %v1301
      %v1304 = vadd.f32 %v1086, %v1302
      %v1305 = vld [vmem:[%s15] sm:$0xff]
      %v1307 = vsel %vm1018, %v1305, 0
      %1309 = vmatprep.subr.mxu0 0.0
      %1310 = vmatpush1.msra.mxu0 0.0
      %1311 = vmatprep.subr.mxu0 0.0
      %1312 = vmatpush1.msra.mxu0 0.0
      %1313 = vmatprep.subr.mxu0 0.0
      %1314 = vmatpush1.msra.mxu0 0.0
      %1315 = vmatprep.subr.mxu0 0.0
      %1316 = vmatpush1.msra.mxu0 0.0
      %1317 = vmatprep.subr.mxu0 0.0
      %1318 = vmatpush1.msra.mxu0 0.0
      %1319 = vmatprep.subr.mxu0 0.0
      %1320 = vmatpush1.msra.mxu0 0.0
      %1321 = vmatprep.subr.mxu0 0.0
      %1322 = vmatpush1.msra.mxu0 0.0
      %1323 = vmatprep.subr.mxu0 0.0
      %1324 = vmatpush1.msra.mxu0 0.0
      %1325 = vmatprep.subr.mxu0 0.0
      %1326 = vmatpush1.msra.mxu0 0.0
      %1327 = vmatprep.subr.mxu0 0.0
      %1328 = vmatpush1.msra.mxu0 0.0
      %1329 = vmatprep.subr.mxu0 0.0
      %1330 = vmatpush1.msra.mxu0 0.0
      %1331 = vmatprep.subr.mxu0 0.0
      %1332 = vmatpush1.msra.mxu0 0.0
      %1333 = vmatprep.subr.mxu0 0.0
      %1334 = vmatpush1.msra.mxu0 0.0
      %1335 = vmatprep.subr.mxu0 0.0
      %1336 = vmatpush1.msra.mxu0 0.0
      %1337 = vmatprep.subr.mxu0 0.0
      %1338 = vmatpush1.msra.mxu0 0.0
      %1339 = vmatprep.subr.mxu0 %v1304
      %1340 = vmatpush1.msra.mxu0 %v1303
      %1341 = vmatprep.subr.mxu0 0.0
      %1342 = vmatpush2.msra.mxu0 0.0
      %1343 = vmatprep.subr.mxu0 0.0
      %1344 = vmatpush2.msra.mxu0 0.0
      %1345 = vmatprep.subr.mxu0 0.0
      %1346 = vmatpush2.msra.mxu0 0.0
      %1347 = vmatprep.subr.mxu0 0.0
      %1348 = vmatpush2.msra.mxu0 0.0
      %1349 = vmatprep.subr.mxu0 0.0
      %1350 = vmatpush2.msra.mxu0 0.0
      %1351 = vmatprep.subr.mxu0 0.0
      %1352 = vmatpush2.msra.mxu0 0.0
      %1353 = vmatprep.subr.mxu0 0.0
      %1354 = vmatpush2.msra.mxu0 0.0
      %1355 = vmatprep.subr.mxu0 0.0
      %1356 = vmatpush2.msra.mxu0 0.0
      %1357 = vmatprep.subr.mxu0 0.0
      %1358 = vmatpush2.msra.mxu0 0.0
      %1359 = vmatprep.subr.mxu0 0.0
      %1360 = vmatpush2.msra.mxu0 0.0
      %1361 = vmatprep.subr.mxu0 0.0
      %1362 = vmatpush2.msra.mxu0 0.0
      %1363 = vmatprep.subr.mxu0 0.0
      %1364 = vmatpush2.msra.mxu0 0.0
      %1365 = vmatprep.subr.mxu0 0.0
      %1366 = vmatpush2.msra.mxu0 0.0
      %1367 = vmatprep.subr.mxu0 0.0
      %1368 = vmatpush2.msra.mxu0 0.0
      %1369 = vmatprep.subr.mxu0 0.0
      %1370 = vmatpush2.msra.mxu0 0.0
      %1371 = vmatprep.subr.mxu0 0.0
      %1372 = vmatpush2.msra.mxu0 0.0
      %1373 = vmatprep.mubr.f32.mxu0 0.0
      %1374 = vmatmul.mubr.f32.gmra.mxu0 %v1307
      %v1375 = vpop.f32.mrf.mxu0
      %v1376 = vadd.f32 0.0, %v1375
      %v1377 = vpop.f32.mrf.mxu0
      %v1378 = vadd.f32 0.0, %v1377
      %1379 = vdwg.mxu0
      %v1380 = vadd.f32 %v1376, %v1378
      %1381 = vadd.xlane.f32.xlu0 %v1380
      %v1382 = vpop.xlane.xlu0 %1381
      %v1383 = vrcp.pop 256.0
      %v1384 = vmul.f32 %v1382, %v1383
      %v1385 = vmax.f32 %v1384, 0.0
      %v1386 = vld [vmem:[%s16] sm:$0xff]
      %v1388 = vsel %vm1018, %v1386, 0
      %1390 = vmatprep.subr.mxu0 0.0
      %1391 = vmatpush1.msra.mxu0 0.0
      %1392 = vmatprep.subr.mxu0 0.0
      %1393 = vmatpush1.msra.mxu0 0.0
      %1394 = vmatprep.subr.mxu0 0.0
      %1395 = vmatpush1.msra.mxu0 0.0
      %1396 = vmatprep.subr.mxu0 0.0
      %1397 = vmatpush1.msra.mxu0 0.0
      %1398 = vmatprep.subr.mxu0 0.0
      %1399 = vmatpush1.msra.mxu0 0.0
      %1400 = vmatprep.subr.mxu0 0.0
      %1401 = vmatpush1.msra.mxu0 0.0
      %1402 = vmatprep.subr.mxu0 0.0
      %1403 = vmatpush1.msra.mxu0 0.0
      %1404 = vmatprep.subr.mxu0 0.0
      %1405 = vmatpush1.msra.mxu0 0.0
      %1406 = vmatprep.subr.mxu0 0.0
      %1407 = vmatpush1.msra.mxu0 0.0
      %1408 = vmatprep.subr.mxu0 0.0
      %1409 = vmatpush1.msra.mxu0 0.0
      %1410 = vmatprep.subr.mxu0 0.0
      %1411 = vmatpush1.msra.mxu0 0.0
      %1412 = vmatprep.subr.mxu0 0.0
      %1413 = vmatpush1.msra.mxu0 0.0
      %1414 = vmatprep.subr.mxu0 0.0
      %1415 = vmatpush1.msra.mxu0 0.0
      %1416 = vmatprep.subr.mxu0 0.0
      %1417 = vmatpush1.msra.mxu0 0.0
      %1418 = vmatprep.subr.mxu0 0.0
      %1419 = vmatpush1.msra.mxu0 0.0
      %1420 = vmatprep.subr.mxu0 %v1385
      %1421 = vmatpush1.msra.mxu0 %v1385
      %1422 = vmatprep.subr.mxu0 0.0
      %1423 = vmatpush2.msra.mxu0 0.0
      %1424 = vmatprep.subr.mxu0 0.0
      %1425 = vmatpush2.msra.mxu0 0.0
      %1426 = vmatprep.subr.mxu0 0.0
      %1427 = vmatpush2.msra.mxu0 0.0
      %1428 = vmatprep.subr.mxu0 0.0
      %1429 = vmatpush2.msra.mxu0 0.0
      %1430 = vmatprep.subr.mxu0 0.0
      %1431 = vmatpush2.msra.mxu0 0.0
      %1432 = vmatprep.subr.mxu0 0.0
      %1433 = vmatpush2.msra.mxu0 0.0
      %1434 = vmatprep.subr.mxu0 0.0
      %1435 = vmatpush2.msra.mxu0 0.0
      %1436 = vmatprep.subr.mxu0 0.0
      %1437 = vmatpush2.msra.mxu0 0.0
      %1438 = vmatprep.subr.mxu0 0.0
      %1439 = vmatpush2.msra.mxu0 0.0
      %1440 = vmatprep.subr.mxu0 0.0
      %1441 = vmatpush2.msra.mxu0 0.0
      %1442 = vmatprep.subr.mxu0 0.0
      %1443 = vmatpush2.msra.mxu0 0.0
      %1444 = vmatprep.subr.mxu0 0.0
      %1445 = vmatpush2.msra.mxu0 0.0
      %1446 = vmatprep.subr.mxu0 0.0
      %1447 = vmatpush2.msra.mxu0 0.0
      %1448 = vmatprep.subr.mxu0 0.0
      %1449 = vmatpush2.msra.mxu0 0.0
      %1450 = vmatprep.subr.mxu0 0.0
      %1451 = vmatpush2.msra.mxu0 0.0
      %1452 = vmatprep.subr.mxu0 0.0
      %1453 = vmatpush2.msra.mxu0 0.0
      %1454 = vmatprep.mubr.f32.mxu0 0.0
      %1455 = vmatmul.mubr.f32.gmra.mxu0 %v1388
      %v1456 = vpop.f32.mrf.mxu0
      %v1457 = vadd.f32 0.0, %v1456
      %v1458 = vpop.f32.mrf.mxu0
      %v1459 = vadd.f32 0.0, %v1458
      %1460 = vdwg.mxu0
      %v1461 = vsub.f32 0.0, %v1457
      %v1462 = vsub.f32 0.0, %v1459
      %v1463 = vmul.f32 %v1461, 1.442695
      %v1464 = vpow.pop %v1463
      %v1465 = vmul.f32 %v1462, 1.442695
      %v1466 = vpow.pop %v1465
      %v1467 = vadd.f32 %v1464, 1.0
      %v1468 = vadd.f32 %v1466, 1.0
      %v1469 = vrcp.pop %v1467
      %v1470 = vmul.f32 1.0, %v1469
      %v1471 = vrcp.pop %v1468
      %v1472 = vmul.f32 1.0, %v1471
      %v1473 = vmul.f32 %v1303, %v1470
      %v1474 = vmul.f32 %v1304, %v1472
      %v1475 = vld [vmem:[%s17] sm:$0xff]
      %1476 = vrot.lane.b32.xlu0 %v1473, 17
      %v1477 = vpop.permute.xlu0 %1476
      %1478 = vrot.lane.b32.xlu0 %v1474, 17
      %v1479 = vpop.permute.xlu0 %1478
      %v1480 = vsel %vm801, %v1477, %v1479
      %v1481 = vsel %vm801, %v1479, %v1477
      %v1482 = vmul.f32 %v1481, %v807
      %v1483 = vmul.f32 %v1480, %v811
      %1484 = vrot.lane.b32.xlu0 %v1473, 16
      %v1485 = vpop.permute.xlu0 %1484
      %1486 = vrot.lane.b32.xlu0 %v1474, 16
      %v1487 = vpop.permute.xlu0 %1486
      %v1488 = vsel %vm818, %v1485, %v1487
      %v1489 = vsel %vm818, %v1487, %v1485
      %v1490 = vmul.f32 %v1489, %v824
      %v1491 = vmul.f32 %v1488, %v828
      %1492 = vrot.lane.b32.xlu0 %v1473, 15
      %v1493 = vpop.permute.xlu0 %1492
      %1494 = vrot.lane.b32.xlu0 %v1474, 15
      %v1495 = vpop.permute.xlu0 %1494
      %v1496 = vsel %vm835, %v1493, %v1495
      %v1497 = vsel %vm835, %v1495, %v1493
      %v1498 = vmul.f32 %v1497, %v841
      %v1499 = vmul.f32 %v1496, %v845
      %1500 = vrot.lane.b32.xlu0 %v1473, 1
      %v1501 = vpop.permute.xlu0 %1500
      %1502 = vrot.lane.b32.xlu0 %v1474, 1
      %v1503 = vpop.permute.xlu0 %1502
      %v1504 = vsel %vm852, %v1501, %v1503
      %v1505 = vsel %vm852, %v1503, %v1501
      %v1506 = vmul.f32 %v1505, %v858
      %v1507 = vmul.f32 %v1504, %v862
      %1508 = vrot.lane.b32.xlu0 %v1473, 127
      %v1509 = vpop.permute.xlu0 %1508
      %1510 = vrot.lane.b32.xlu0 %v1474, 127
      %v1511 = vpop.permute.xlu0 %1510
      %v1512 = vsel %vm869, %v1509, %v1511
      %v1513 = vsel %vm869, %v1511, %v1509
      %v1514 = vmul.f32 %v1512, %v875
      %v1515 = vmul.f32 %v1513, %v879
      %1516 = vrot.lane.b32.xlu0 %v1473, 113
      %v1517 = vpop.permute.xlu0 %1516
      %1518 = vrot.lane.b32.xlu0 %v1474, 113
      %v1519 = vpop.permute.xlu0 %1518
      %v1520 = vsel %vm886, %v1517, %v1519
      %v1521 = vsel %vm886, %v1519, %v1517
      %v1522 = vmul.f32 %v1520, %v892
      %v1523 = vmul.f32 %v1521, %v896
      %1524 = vrot.lane.b32.xlu0 %v1473, 112
      %v1525 = vpop.permute.xlu0 %1524
      %1526 = vrot.lane.b32.xlu0 %v1474, 112
      %v1527 = vpop.permute.xlu0 %1526
      %v1528 = vsel %vm903, %v1525, %v1527
      %v1529 = vsel %vm903, %v1527, %v1525
      %v1530 = vmul.f32 %v1528, %v909
      %v1531 = vmul.f32 %v1529, %v913
      %1532 = vrot.lane.b32.xlu0 %v1473, 111
      %v1533 = vpop.permute.xlu0 %1532
      %1534 = vrot.lane.b32.xlu0 %v1474, 111
      %v1535 = vpop.permute.xlu0 %1534
      %v1536 = vsel %vm920, %v1533, %v1535
      %v1537 = vsel %vm920, %v1535, %v1533
      %v1538 = vmul.f32 %v1536, %v926
      %v1539 = vmul.f32 %v1537, %v930
      %v1540 = vpack.c.bf16 %v1475, %v1475
      %v1541 = vpack.c.bf16 %v1490, %v1482
      %v1542 = vpack.c.bf16 %v1491, %v1483
      %v1543 = vpack.c.bf16 %v1506, %v1498
      %v1544 = vpack.c.bf16 %v1507, %v1499
      %v1545 = vpack.c.bf16 %v1514, %v1473
      %v1546 = vpack.c.bf16 %v1515, %v1474
      %v1547 = vpack.c.bf16 %v1530, %v1522
      %v1548 = vpack.c.bf16 %v1531, %v1523
      %v1549 = vpack.c.bf16 %v1538, %v1538
      %v1550 = vpack.c.bf16 %v1539, %v1539
      %v1552 = vsel %vm944, %v1540, 0
      %v1555 = vsel %vm948, %v1549, 0
      %v1558 = vsel %vm948, %v1550, 0
      %1560 = vmatprep.subr.bf16.mxu0 0
      %1561 = vmatpush1.bf16.msra.mxu0 0
      %1562 = vmatprep.subr.bf16.mxu0 0
      %1563 = vmatpush1.bf16.msra.mxu0 0
      %1564 = vmatprep.subr.bf16.mxu0 0
      %1565 = vmatpush1.bf16.msra.mxu0 0
      %1566 = vmatprep.subr.bf16.mxu0 %v1558
      %1567 = vmatpush1.bf16.msra.mxu0 %v1555
      %1568 = vmatprep.subr.bf16.mxu0 %v1548
      %1569 = vmatpush1.bf16.msra.mxu0 %v1547
      %1570 = vmatprep.subr.bf16.mxu0 %v1546
      %1571 = vmatpush1.bf16.msra.mxu0 %v1545
      %1572 = vmatprep.subr.bf16.mxu0 %v1544
      %1573 = vmatpush1.bf16.msra.mxu0 %v1543
      %1574 = vmatprep.subr.bf16.mxu0 %v1542
      %1575 = vmatpush1.bf16.msra.mxu0 %v1541
      %1576 = vmatprep.subr.bf16.mxu0 0
      %1577 = vmatpush2.bf16.msra.mxu0 0
      %1578 = vmatprep.subr.bf16.mxu0 0
      %1579 = vmatpush2.bf16.msra.mxu0 0
      %1580 = vmatprep.subr.bf16.mxu0 0
      %1581 = vmatpush2.bf16.msra.mxu0 0
      %1582 = vmatprep.subr.bf16.mxu0 0
      %1583 = vmatpush2.bf16.msra.mxu0 0
      %1584 = vmatprep.subr.bf16.mxu0 0
      %1585 = vmatpush2.bf16.msra.mxu0 0
      %1586 = vmatprep.subr.bf16.mxu0 0
      %1587 = vmatpush2.bf16.msra.mxu0 0
      %1588 = vmatprep.subr.bf16.mxu0 0
      %1589 = vmatpush2.bf16.msra.mxu0 0
      %1590 = vmatprep.subr.bf16.mxu0 0
      %1591 = vmatpush2.bf16.msra.mxu0 0
      %1592 = vmatprep.mubr.bf16.mxu0 0
      %1593 = vmatmul.mubr.bf16.gmra.mxu0 %v1552
      %v1594 = vpop.f32.mrf.mxu0
      %v1595 = vadd.f32 0.0, %v1594
      %v1596 = vpop.f32.mrf.mxu0
      %v1597 = vadd.f32 0.0, %v1596
      %v1598 = vpop.f32.mrf.mxu0
      %v1599 = vpop.f32.mrf.mxu0
      %1600 = vdwg.mxu0
      %v1601 = vld [vmem:[%s18] sm:$0xff]
      %1603 = vset.pattern.permute.xlu0 0
      %1604 = vperm.xlu0 %1603, %v1601
      %v1605 = vpop.permute.xlu0 %1604
      %v1607 = vmul.f32 %v1595, %v1605
      %v1608 = vmul.f32 %v1597, %v1605
      %v1609 = vld [vmem:[%s19] sm:$0xff]
      %1611 = vset.pattern.permute.xlu0 0
      %1612 = vperm.xlu0 %1611, %v1609
      %v1613 = vpop.permute.xlu0 %1612
      %v1615 = vadd.f32 %v1607, %v1613
      %v1616 = vadd.f32 %v1608, %v1613
      %v1617 = vmax.f32 %v1615, 0.0
      %v1618 = vmax.f32 %v1616, 0.0
      %v1619 = vld [vmem:[%s20] sm:$0xf]
      %v1620 = vpack.c.bf16 %v1619, %v1619
      %v1621 = vpack.c.bf16 %v1617, %v1617
      %v1622 = vpack.c.bf16 %v1618, %v1618
      %v1624 = vsel %vm1018, %v1620, 0
      %v1627 = vsel %vm948, %v1621, 0
      %v1630 = vsel %vm948, %v1622, 0
      %1632 = vmatprep.subr.bf16.mxu0 0
      %1633 = vmatpush1.bf16.msra.mxu0 0
      %1634 = vmatprep.subr.bf16.mxu0 0
      %1635 = vmatpush1.bf16.msra.mxu0 0
      %1636 = vmatprep.subr.bf16.mxu0 0
      %1637 = vmatpush1.bf16.msra.mxu0 0
      %1638 = vmatprep.subr.bf16.mxu0 0
      %1639 = vmatpush1.bf16.msra.mxu0 0
      %1640 = vmatprep.subr.bf16.mxu0 0
      %1641 = vmatpush1.bf16.msra.mxu0 0
      %1642 = vmatprep.subr.bf16.mxu0 0
      %1643 = vmatpush1.bf16.msra.mxu0 0
      %1644 = vmatprep.subr.bf16.mxu0 0
      %1645 = vmatpush1.bf16.msra.mxu0 0
      %1646 = vmatprep.subr.bf16.mxu0 %v1630
      %1647 = vmatpush1.bf16.msra.mxu0 %v1627
      %1648 = vmatprep.subr.bf16.mxu0 0
      %1649 = vmatpush2.bf16.msra.mxu0 0
      %1650 = vmatprep.subr.bf16.mxu0 0
      %1651 = vmatpush2.bf16.msra.mxu0 0
      %1652 = vmatprep.subr.bf16.mxu0 0
      %1653 = vmatpush2.bf16.msra.mxu0 0
      %1654 = vmatprep.subr.bf16.mxu0 0
      %1655 = vmatpush2.bf16.msra.mxu0 0
      %1656 = vmatprep.subr.bf16.mxu0 0
      %1657 = vmatpush2.bf16.msra.mxu0 0
      %1658 = vmatprep.subr.bf16.mxu0 0
      %1659 = vmatpush2.bf16.msra.mxu0 0
      %1660 = vmatprep.subr.bf16.mxu0 0
      %1661 = vmatpush2.bf16.msra.mxu0 0
      %1662 = vmatprep.subr.bf16.mxu0 0
      %1663 = vmatpush2.bf16.msra.mxu0 0
      %1664 = vmatprep.mubr.bf16.mxu0 0
      %1665 = vmatmul.mubr.bf16.gmra.mxu0 %v1624
      %v1666 = vpop.f32.mrf.mxu0
      %v1667 = vadd.f32 0.0, %v1666
      %v1668 = vpop.f32.mrf.mxu0
      %v1669 = vadd.f32 0.0, %v1668
      %v1670 = vpop.f32.mrf.mxu0
      %v1671 = vpop.f32.mrf.mxu0
      %1672 = vdwg.mxu0
      %v1673 = vld [vmem:[%s21] sm:$0xf]
      %1675 = vset.pattern.permute.xlu0 0
      %1676 = vperm.xlu0 %1675, %v1673
      %v1677 = vpop.permute.xlu0 %1676
      %v1679 = vmul.f32 %v1667, %v1677
      %v1680 = vmul.f32 %v1669, %v1677
      %v1681 = vld [vmem:[%s22] sm:$0xf]
      %1683 = vset.pattern.permute.xlu0 0
      %1684 = vperm.xlu0 %1683, %v1681
      %v1685 = vpop.permute.xlu0 %1684
      %v1687 = vadd.f32 %v1679, %v1685
      %v1688 = vadd.f32 %v1680, %v1685
      %v1689 = vmax.f32 %v1687, 0.0
      %v1690 = vmax.f32 %v1688, 0.0
      %v1691 = vadd.f32 %v1689, %v790
      %v1692 = vadd.f32 %v1690, %v791
      %v1693 = vld [vmem:[%s23] sm:$0xf]
      %v1694 = vpack.c.bf16 %v1693, %v1693
      %v1695 = vpack.c.bf16 %v1691, %v1691
      %v1696 = vpack.c.bf16 %v1692, %v1692
      %v1697 = vld [vmem:[%s24] sm:$0xf]
      %1699 = vset.pattern.permute.xlu0 0
      %1700 = vperm.xlu0 %1699, %v1697
      %v1701 = vpop.permute.xlu0 %1700
      %vm1703 = vcmask 31744
      %v1705 = vsel %vm1703, %v1694, 0
      %vm1707 = vcmask 1041408
      %v1709 = vsel %vm1707, %v1695, 0
      %v1712 = vsel %vm1707, %v1696, 0
      %1714 = vmatprep.subr.bf16.mxu0 0
      %1715 = vmatpush1.bf16.msra.mxu0 0
      %1716 = vmatprep.subr.bf16.mxu0 0
      %1717 = vmatpush1.bf16.msra.mxu0 0
      %1718 = vmatprep.subr.bf16.mxu0 0
      %1719 = vmatpush1.bf16.msra.mxu0 0
      %1720 = vmatprep.subr.bf16.mxu0 0
      %1721 = vmatpush1.bf16.msra.mxu0 0
      %1722 = vmatprep.subr.bf16.mxu0 0
      %1723 = vmatpush1.bf16.msra.mxu0 0
      %1724 = vmatprep.subr.bf16.mxu0 0
      %1725 = vmatpush1.bf16.msra.mxu0 0
      %1726 = vmatprep.subr.bf16.mxu0 0
      %1727 = vmatpush1.bf16.msra.mxu0 0
      %1728 = vmatprep.subr.bf16.mxu0 %v1712
      %1729 = vmatpush1.bf16.msra.mxu0 %v1709
      %1730 = vmatprep.subr.bf16.mxu0 0
      %1731 = vmatpush2.bf16.msra.mxu0 0
      %1732 = vmatprep.subr.bf16.mxu0 0
      %1733 = vmatpush2.bf16.msra.mxu0 0
      %1734 = vmatprep.subr.bf16.mxu0 0
      %1735 = vmatpush2.bf16.msra.mxu0 0
      %1736 = vmatprep.subr.bf16.mxu0 0
      %1737 = vmatpush2.bf16.msra.mxu0 0
      %1738 = vmatprep.subr.bf16.mxu0 0
      %1739 = vmatpush2.bf16.msra.mxu0 0
      %1740 = vmatprep.subr.bf16.mxu0 0
      %1741 = vmatpush2.bf16.msra.mxu0 0
      %1742 = vmatprep.subr.bf16.mxu0 0
      %1743 = vmatpush2.bf16.msra.mxu0 0
      %1744 = vmatprep.subr.bf16.mxu0 0
      %1745 = vmatpush2.bf16.msra.mxu0 0
      %1746 = vmatprep.mubr.bf16.mxu0 0
      %1747 = vmatmul.mubr.bf16.gmra.mxu0 %v1705
      %v1748 = vpop.f32.mrf.mxu0
      %v1749 = vadd.f32 %v1701, %v1748
      %v1750 = vpop.f32.mrf.mxu0
      %v1751 = vadd.f32 %v1701, %v1750
      %v1752 = vpop.f32.mrf.mxu0
      %v1753 = vpop.f32.mrf.mxu0
      %1754 = vdwg.mxu0
      %v1757 = vcombine.low %v1749, %v1751
      %1759 = vst [vmem:[%s784] sm:$0xff] %v1757
      %p1760 = scmp.lt.s32.totalorder %s36, 1
      %s1761 = scalar_select %p1760, %s36, 1
      %s1762 = smul.addr %s1761, 2
      %s1763 = smul.addr %s1762, 4
      %s1764 = scalar_lea.vmem %s25, %s1763
      // Predicated region
      $region121: #{guided_upsampling_block.1} parent=119 // pred_check
        %p1765 = pneg %p589
      $region122: #{guided_upsampling_block.1} parent=119 // pred_check_branch
        %1767 = sbr.rel (%p1765) target = $region124
      $region123: #{guided_upsampling_block.1} parent=119 // pred_region
        _
      $region124: #{guided_upsampling_block.1} parent=119 // pred_fallthru
        _
    $region120: #{guided_upsampling_block.1} parent=5 // pred_fallthru
      _
    %p1768 = scmp.le.s32.totalorder 2, %s31
    // Predicated region
    $region125: #{guided_upsampling_block.1} parent=5 // pred_check
      %p1769 = pneg %p1768
    $region126: #{guided_upsampling_block.1} parent=5 // pred_check_branch
      %1771 = sbr.rel (%p1769) target = $region128
    $region127: #{guided_upsampling_block.1} parent=5 // pred_region
      %s1772 = ssub.s32 %s31, 2
      // Predicated region
      $region129: #{guided_upsampling_block.1} parent=127 // pred_check
        %p1773 = pneg %p595
      $region130: #{guided_upsampling_block.1} parent=127 // pred_check_branch
        %1775 = sbr.rel (%p1773) target = $region132
      $region131: #{guided_upsampling_block.1} parent=127 // pred_region
        %p1776 = scmp.lt.s32.totalorder %s37, 1
        %s1777 = scalar_select %p1776, %s37, 1
        %s1778 = smul.addr %s1777, 2
        %s1779 = smul.addr %s1778, 4
        %s1780 = scalar_lea.vmem %s25, %s1779
      $region132: #{guided_upsampling_block.1} parent=127 // pred_fallthru
        _
    $region128: #{guided_upsampling_block.1} parent=5 // pred_fallthru
      _
  $region6: #{guided_upsampling_block.1} parent=0 // loop_footer
    %s35 = sadd.s32 1, %s31
  $region7: #{guided_upsampling_block.1} parent=0 // loop_footer_branch
    %30 = sbr.rel target = $region3
  $region8: #{guided_upsampling_block.1} parent=0 // loop_exit
    _

</llo_original>
